<compile_context>
chip_gen: v7x
topology: tpu7x:2x2x1
jax: 0.10.0
libtpu: 0.0.40
codegen_flags: <defaults>
</compile_context>

<pallas_src>
import jax
import jax.numpy as jnp
import numpy as np
from jax.experimental import pallas as pl
from jax.experimental.pallas import tpu as pltpu

# Small, module-consistent shapes:
#   feature_size=(16,16), channels=[4,4] -> one conv layer (1 -> 4 ch), latent_dims=8
B, CIN, H, W = 2, 1, 16, 16
COUT, KH, KW = 4, 5, 5
PAD = 2
LATENT = 8
HW = H * W                    # 256
FLAT = COUT * HW              # 1024
NTAPS = CIN * KH * KW         # 25
BHW = B * HW                  # 512

assert CIN == 1, "CNNEncoder hardcodes in_channels=1 for its (single) conv layer"


def _tap_masks() -> np.ndarray:
    """0/1 validity mask per conv tap over flattened (b,h,w) lane positions.

    Replaces the in-kernel zero-padded scratch: tap (kh,kw) reads the input
    shifted by (kh-PAD, kw-PAD); positions whose source falls outside the
    image are zeroed by this mask.  Pure host/numpy, trace-time constant.
    """
    pos = np.arange(BHW)
    h_idx = (pos % HW) // W
    w_idx = pos % W
    m = np.zeros((NTAPS, BHW), np.float32)
    for kh in range(KH):
        for kw in range(KW):
            dh, dw = kh - PAD, kw - PAD
            ok = ((h_idx + dh >= 0) & (h_idx + dh < H) &
                  (w_idx + dw >= 0) & (w_idx + dw < W))
            m[kh * KW + kw] = ok
    return m


_TAP_MASKS_NP = _tap_masks()


def cnn_encoder_kernel(x_ref, mask_ref, wconv_ref, bconv_ref, wfc_ref, bfc_ref,
                       out_ref, pm_ref, flat_ref):
    # x_ref    : [1, B*H*W]        f32 VMEM  (row-major flatten of NCHW input, CIN=1)
    # mask_ref : [NTAPS, B*H*W]    f32 VMEM  (0/1 tap-validity masks == implicit zero pad)
    # wconv_ref: [COUT, NTAPS]     f32 VMEM  (conv taps, row-major (kh,kw))
    # bconv_ref: [COUT, 1]         f32 VMEM
    # wfc_ref  : [LATENT, FLAT]    f32 VMEM  (untransposed torch Linear weight)
    # bfc_ref  : [1, LATENT]       f32 VMEM
    # out_ref  : [B, LATENT]       f32 VMEM
    # pm_ref   : [NTAPS, B*H*W]    f32 VMEM scratch (im2col patch matrix)
    # flat_ref : [B, FLAT]         f32 VMEM scratch (C-major flatten, lane-dense)

    x2 = x_ref[...]  # [1, BHW], lane-dense

    # --- im2col: every tap row is a static lane-roll of the flattened input,
    #     zeroed outside the valid window by the precomputed 0/1 mask.
    #     Each row is a full-width, lane-dense [1, 512] store. ---
    for kh in range(KH):
        for kw in range(KW):
            dh, dw = kh - PAD, kw - PAD
            d = (dh * W + dw) % BHW          # static, non-negative roll amount
            if d == 0:
                rolled = x2
            else:
                # rolled[0, p] == x2[0, (p + d) mod BHW]  (explicit static roll)
                rolled = jnp.concatenate([x2[:, d:], x2[:, :d]], axis=1)
            t = kh * KW + kw
            pm_ref[t:t + 1, :] = rolled * mask_ref[t:t + 1, :]

    # --- conv for ALL output channels in one MXU matmul, then bias + ReLU ---
    conv = jax.lax.dot_general(
        wconv_ref[...], pm_ref[...],
        dimension_numbers=(((1,), (0,)), ((), ())),
        preferred_element_type=jnp.float32)                 # [COUT, B*HW]
    act = jnp.maximum(conv + bconv_ref[...], 0.0)

    # --- C-major flatten: lane-dense slab stores; offsets co*256 are
    #     multiples of 128, so these are unmasked lane-wise (8 stores total). ---
    for b in range(B):
        for co in range(COUT):
            flat_ref[b:b + 1, co * HW:(co + 1) * HW] = act[co:co + 1, b * HW:(b + 1) * HW]

    # --- fused FC on the MXU: contraction over the lane-dense 1024 axis
    #     against the untransposed [LATENT, FLAT] weight (== flat @ wfc.T). ---
    out_ref[...] = jax.lax.dot_general(
        flat_ref[...], wfc_ref[...],
        dimension_numbers=(((1,), (1,)), ((), ())),
        preferred_element_type=jnp.float32) + bfc_ref[...]


def cnn_encoder_forward(x, wconv, bconv, wfc, bfc):
    # x: [B, 1, H, W] f32 (NCHW, same as PyTorch). wconv: [COUT, CIN, KH, KW].
    # wfc: [LATENT, FLAT] (PyTorch Linear weight layout), bfc: [LATENT].
    x2 = x.reshape(1, BHW)                     # metadata-only reshapes
    wt = wconv.reshape(COUT, NTAPS)
    bconv2 = bconv.reshape(COUT, 1)
    bfc2 = bfc.reshape(1, LATENT)
    masks = jnp.asarray(_TAP_MASKS_NP)

    vmem = lambda: pl.BlockSpec(memory_space=pltpu.MemorySpace.VMEM)
    return pl.pallas_call(
        cnn_encoder_kernel,
        out_shape=jax.ShapeDtypeStruct((B, LATENT), jnp.float32),
        in_specs=[vmem() for _ in range(6)],
        out_specs=vmem(),
        scratch_shapes=[
            pltpu.VMEM((NTAPS, BHW), jnp.float32),   # im2col patch matrix
            pltpu.VMEM((B, FLAT), jnp.float32),      # flattened activations
        ],
        # No grid: total working set is ~0.12 MiB, far under VMEM on v5e/v6e/v7x,
        # and at B=2 a grid would only add per-step overhead.
        # TODO(synk): at production batch sizes, tile B over a grid with
        # dimension_semantics=("parallel",) (uses both v7x TensorCores) and/or
        # fuse the second CCA view into the same call to amortize launch overhead.
    )(x2, masks, wt, bconv2, wfc, bfc2)


def reference_forward(x, wconv, bconv, wfc, bfc):
    conv = jax.lax.conv_general_dilated(
        x, wconv, window_strides=(1, 1), padding=((PAD, PAD), (PAD, PAD)),
        dimension_numbers=("NCHW", "OIHW", "NCHW"),
        precision=jax.lax.Precision.HIGHEST)
    act = jnp.maximum(conv + bconv[None, :, None, None], 0.0)
    flat = act.reshape(B, -1)
    return jnp.dot(flat, wfc.T, precision=jax.lax.Precision.HIGHEST) + bfc


if __name__ == "__main__":
    key = jax.random.PRNGKey(0)
    k1, k2, k3, k4, k5 = jax.random.split(key, 5)

    x = jax.random.normal(k1, (B, CIN, H, W), jnp.float32)

    # Deterministic parameter init (PyTorch-style uniform fan-in bounds, synthetic).
    conv_bound = 1.0 / np.sqrt(CIN * KH * KW)
    wconv = jax.random.uniform(k2, (COUT, CIN, KH, KW), jnp.float32, -conv_bound, conv_bound)
    bconv = jax.random.uniform(k3, (COUT,), jnp.float32, -conv_bound, conv_bound)
    fc_bound = 1.0 / np.sqrt(FLAT)
    wfc = jax.random.uniform(k4, (LATENT, FLAT), jnp.float32, -fc_bound, fc_bound)
    bfc = jax.random.uniform(k5, (LATENT,), jnp.float32, -fc_bound, fc_bound)

    y = jax.block_until_ready(cnn_encoder_forward(x, wconv, bconv, wfc, bfc))
    y_ref = jax.block_until_ready(reference_forward(x, wconv, bconv, wfc, bfc))

    assert y.shape == (B, LATENT)
    np.testing.assert_allclose(np.asarray(y), np.asarray(y_ref), rtol=1e-3, atol=1e-3)
    print("KERNEL_OK")
</pallas_src>

<mosaic_0001>
module attributes {stable_mosaic.version = 11 : i64} {
  func.func @cnn_encoder_kernel(%arg0: memref<1x512xf32, #tpu.memory_space<vmem>>, %arg1: memref<25x512xf32, #tpu.memory_space<vmem>>, %arg2: memref<4x25xf32, #tpu.memory_space<vmem>>, %arg3: memref<4x1xf32, #tpu.memory_space<vmem>>, %arg4: memref<8x1024xf32, #tpu.memory_space<vmem>>, %arg5: memref<1x8xf32, #tpu.memory_space<vmem>>, %arg6: memref<2x8xf32, #tpu.memory_space<vmem>>, %arg7: memref<25x512xf32, #tpu.memory_space<vmem>>, %arg8: memref<2x1024xf32, #tpu.memory_space<vmem>>) attributes {dimension_semantics = [], scalar_prefetch = 0 : i64, scratch_operands = 2 : i64, tpu.core_type = #tpu.core_type<tc>} {
    %c0 = arith.constant 0 : index
    %c0_0 = arith.constant 0 : index
    %0 = vector.load %arg0[%c0, %c0_0] : memref<1x512xf32, #tpu.memory_space<vmem>>, vector<1x512xf32>
    %1 = vector.extract_strided_slice %0 {offsets = [0, 478], sizes = [1, 34], strides = [1, 1]} : vector<1x512xf32> to vector<1x34xf32>
    %2 = vector.extract_strided_slice %0 {offsets = [0, 0], sizes = [1, 478], strides = [1, 1]} : vector<1x512xf32> to vector<1x478xf32>
    %3 = tpu.concatenate %1, %2 in 1 : vector<1x34xf32>, vector<1x478xf32> -> vector<1x512xf32>
    %c0_1 = arith.constant 0 : index
    %c0_2 = arith.constant 0 : index
    %4 = vector.load %arg1[%c0_1, %c0_2] : memref<25x512xf32, #tpu.memory_space<vmem>>, vector<1x512xf32>
    %5 = arith.mulf %3, %4 : vector<1x512xf32>
    %c0_3 = arith.constant 0 : index
    %c0_4 = arith.constant 0 : index
    %6 = vector.load %arg7[%c0_3, %c0_4] : memref<25x512xf32, #tpu.memory_space<vmem>>, vector<1x512xf32>
    tpu.vector_store %arg7[%c0_3, %c0_4], %5 {strides = array<i32>} : memref<25x512xf32, #tpu.memory_space<vmem>>, vector<1x512xf32>,
    %7 = vector.extract_strided_slice %0 {offsets = [0, 479], sizes = [1, 33], strides = [1, 1]} : vector<1x512xf32> to vector<1x33xf32>
    %8 = vector.extract_strided_slice %0 {offsets = [0, 0], sizes = [1, 479], strides = [1, 1]} : vector<1x512xf32> to vector<1x479xf32>
    %9 = tpu.concatenate %7, %8 in 1 : vector<1x33xf32>, vector<1x479xf32> -> vector<1x512xf32>
    %c1 = arith.constant 1 : index
    %c0_5 = arith.constant 0 : index
    %10 = vector.load %arg1[%c1, %c0_5] : memref<25x512xf32, #tpu.memory_space<vmem>>, vector<1x512xf32>
    %11 = arith.mulf %9, %10 : vector<1x512xf32>
    %c1_6 = arith.constant 1 : index
    %c0_7 = arith.constant 0 : index
    %12 = vector.load %arg7[%c1_6, %c0_7] : memref<25x512xf32, #tpu.memory_space<vmem>>, vector<1x512xf32>
    tpu.vector_store %arg7[%c1_6, %c0_7], %11 {strides = array<i32>} : memref<25x512xf32, #tpu.memory_space<vmem>>, vector<1x512xf32>,
    %13 = vector.extract_strided_slice %0 {offsets = [0, 480], sizes = [1, 32], strides = [1, 1]} : vector<1x512xf32> to vector<1x32xf32>
    %14 = vector.extract_strided_slice %0 {offsets = [0, 0], sizes = [1, 480], strides = [1, 1]} : vector<1x512xf32> to vector<1x480xf32>
    %15 = tpu.concatenate %13, %14 in 1 : vector<1x32xf32>, vector<1x480xf32> -> vector<1x512xf32>
    %c2 = arith.constant 2 : index
    %c0_8 = arith.constant 0 : index
    %16 = vector.load %arg1[%c2, %c0_8] : memref<25x512xf32, #tpu.memory_space<vmem>>, vector<1x512xf32>
    %17 = arith.mulf %15, %16 : vector<1x512xf32>
    %c2_9 = arith.constant 2 : index
    %c0_10 = arith.constant 0 : index
    %18 = vector.load %arg7[%c2_9, %c0_10] : memref<25x512xf32, #tpu.memory_space<vmem>>, vector<1x512xf32>
    tpu.vector_store %arg7[%c2_9, %c0_10], %17 {strides = array<i32>} : memref<25x512xf32, #tpu.memory_space<vmem>>, vector<1x512xf32>,
    %19 = vector.extract_strided_slice %0 {offsets = [0, 481], sizes = [1, 31], strides = [1, 1]} : vector<1x512xf32> to vector<1x31xf32>
    %20 = vector.extract_strided_slice %0 {offsets = [0, 0], sizes = [1, 481], strides = [1, 1]} : vector<1x512xf32> to vector<1x481xf32>
    %21 = tpu.concatenate %19, %20 in 1 : vector<1x31xf32>, vector<1x481xf32> -> vector<1x512xf32>
    %c3 = arith.constant 3 : index
    %c0_11 = arith.constant 0 : index
    %22 = vector.load %arg1[%c3, %c0_11] : memref<25x512xf32, #tpu.memory_space<vmem>>, vector<1x512xf32>
    %23 = arith.mulf %21, %22 : vector<1x512xf32>
    %c3_12 = arith.constant 3 : index
    %c0_13 = arith.constant 0 : index
    %24 = vector.load %arg7[%c3_12, %c0_13] : memref<25x512xf32, #tpu.memory_space<vmem>>, vector<1x512xf32>
    tpu.vector_store %arg7[%c3_12, %c0_13], %23 {strides = array<i32>} : memref<25x512xf32, #tpu.memory_space<vmem>>, vector<1x512xf32>,
    %25 = vector.extract_strided_slice %0 {offsets = [0, 482], sizes = [1, 30], strides = [1, 1]} : vector<1x512xf32> to vector<1x30xf32>
    %26 = vector.extract_strided_slice %0 {offsets = [0, 0], sizes = [1, 482], strides = [1, 1]} : vector<1x512xf32> to vector<1x482xf32>
    %27 = tpu.concatenate %25, %26 in 1 : vector<1x30xf32>, vector<1x482xf32> -> vector<1x512xf32>
    %c4 = arith.constant 4 : index
    %c0_14 = arith.constant 0 : index
    %28 = vector.load %arg1[%c4, %c0_14] : memref<25x512xf32, #tpu.memory_space<vmem>>, vector<1x512xf32>
    %29 = arith.mulf %27, %28 : vector<1x512xf32>
    %c4_15 = arith.constant 4 : index
    %c0_16 = arith.constant 0 : index
    %30 = vector.load %arg7[%c4_15, %c0_16] : memref<25x512xf32, #tpu.memory_space<vmem>>, vector<1x512xf32>
    tpu.vector_store %arg7[%c4_15, %c0_16], %29 {strides = array<i32>} : memref<25x512xf32, #tpu.memory_space<vmem>>, vector<1x512xf32>,
    %31 = vector.extract_strided_slice %0 {offsets = [0, 494], sizes = [1, 18], strides = [1, 1]} : vector<1x512xf32> to vector<1x18xf32>
    %32 = vector.extract_strided_slice %0 {offsets = [0, 0], sizes = [1, 494], strides = [1, 1]} : vector<1x512xf32> to vector<1x494xf32>
    %33 = tpu.concatenate %31, %32 in 1 : vector<1x18xf32>, vector<1x494xf32> -> vector<1x512xf32>
    %c5 = arith.constant 5 : index
    %c0_17 = arith.constant 0 : index
    %34 = vector.load %arg1[%c5, %c0_17] : memref<25x512xf32, #tpu.memory_space<vmem>>, vector<1x512xf32>
    %35 = arith.mulf %33, %34 : vector<1x512xf32>
    %c5_18 = arith.constant 5 : index
    %c0_19 = arith.constant 0 : index
    %36 = vector.load %arg7[%c5_18, %c0_19] : memref<25x512xf32, #tpu.memory_space<vmem>>, vector<1x512xf32>
    tpu.vector_store %arg7[%c5_18, %c0_19], %35 {strides = array<i32>} : memref<25x512xf32, #tpu.memory_space<vmem>>, vector<1x512xf32>,
    %37 = vector.extract_strided_slice %0 {offsets = [0, 495], sizes = [1, 17], strides = [1, 1]} : vector<1x512xf32> to vector<1x17xf32>
    %38 = vector.extract_strided_slice %0 {offsets = [0, 0], sizes = [1, 495], strides = [1, 1]} : vector<1x512xf32> to vector<1x495xf32>
    %39 = tpu.concatenate %37, %38 in 1 : vector<1x17xf32>, vector<1x495xf32> -> vector<1x512xf32>
    %c6 = arith.constant 6 : index
    %c0_20 = arith.constant 0 : index
    %40 = vector.load %arg1[%c6, %c0_20] : memref<25x512xf32, #tpu.memory_space<vmem>>, vector<1x512xf32>
    %41 = arith.mulf %39, %40 : vector<1x512xf32>
    %c6_21 = arith.constant 6 : index
    %c0_22 = arith.constant 0 : index
    %42 = vector.load %arg7[%c6_21, %c0_22] : memref<25x512xf32, #tpu.memory_space<vmem>>, vector<1x512xf32>
    tpu.vector_store %arg7[%c6_21, %c0_22], %41 {strides = array<i32>} : memref<25x512xf32, #tpu.memory_space<vmem>>, vector<1x512xf32>,
    %43 = vector.extract_strided_slice %0 {offsets = [0, 496], sizes = [1, 16], strides = [1, 1]} : vector<1x512xf32> to vector<1x16xf32>
    %44 = vector.extract_strided_slice %0 {offsets = [0, 0], sizes = [1, 496], strides = [1, 1]} : vector<1x512xf32> to vector<1x496xf32>
    %45 = tpu.concatenate %43, %44 in 1 : vector<1x16xf32>, vector<1x496xf32> -> vector<1x512xf32>
    %c7 = arith.constant 7 : index
    %c0_23 = arith.constant 0 : index
    %46 = vector.load %arg1[%c7, %c0_23] : memref<25x512xf32, #tpu.memory_space<vmem>>, vector<1x512xf32>
    %47 = arith.mulf %45, %46 : vector<1x512xf32>
    %c7_24 = arith.constant 7 : index
    %c0_25 = arith.constant 0 : index
    %48 = vector.load %arg7[%c7_24, %c0_25] : memref<25x512xf32, #tpu.memory_space<vmem>>, vector<1x512xf32>
    tpu.vector_store %arg7[%c7_24, %c0_25], %47 {strides = array<i32>} : memref<25x512xf32, #tpu.memory_space<vmem>>, vector<1x512xf32>,
    %49 = vector.extract_strided_slice %0 {offsets = [0, 497], sizes = [1, 15], strides = [1, 1]} : vector<1x512xf32> to vector<1x15xf32>
    %50 = vector.extract_strided_slice %0 {offsets = [0, 0], sizes = [1, 497], strides = [1, 1]} : vector<1x512xf32> to vector<1x497xf32>
    %51 = tpu.concatenate %49, %50 in 1 : vector<1x15xf32>, vector<1x497xf32> -> vector<1x512xf32>
    %c8 = arith.constant 8 : index
    %c0_26 = arith.constant 0 : index
    %52 = vector.load %arg1[%c8, %c0_26] : memref<25x512xf32, #tpu.memory_space<vmem>>, vector<1x512xf32>
    %53 = arith.mulf %51, %52 : vector<1x512xf32>
    %c8_27 = arith.constant 8 : index
    %c0_28 = arith.constant 0 : index
    %54 = vector.load %arg7[%c8_27, %c0_28] : memref<25x512xf32, #tpu.memory_space<vmem>>, vector<1x512xf32>
    tpu.vector_store %arg7[%c8_27, %c0_28], %53 {strides = array<i32>} : memref<25x512xf32, #tpu.memory_space<vmem>>, vector<1x512xf32>,
    %55 = vector.extract_strided_slice %0 {offsets = [0, 498], sizes = [1, 14], strides = [1, 1]} : vector<1x512xf32> to vector<1x14xf32>
    %56 = vector.extract_strided_slice %0 {offsets = [0, 0], sizes = [1, 498], strides = [1, 1]} : vector<1x512xf32> to vector<1x498xf32>
    %57 = tpu.concatenate %55, %56 in 1 : vector<1x14xf32>, vector<1x498xf32> -> vector<1x512xf32>
    %c9 = arith.constant 9 : index
    %c0_29 = arith.constant 0 : index
    %58 = vector.load %arg1[%c9, %c0_29] : memref<25x512xf32, #tpu.memory_space<vmem>>, vector<1x512xf32>
    %59 = arith.mulf %57, %58 : vector<1x512xf32>
    %c9_30 = arith.constant 9 : index
    %c0_31 = arith.constant 0 : index
    %60 = vector.load %arg7[%c9_30, %c0_31] : memref<25x512xf32, #tpu.memory_space<vmem>>, vector<1x512xf32>
    tpu.vector_store %arg7[%c9_30, %c0_31], %59 {strides = array<i32>} : memref<25x512xf32, #tpu.memory_space<vmem>>, vector<1x512xf32>,
    %61 = vector.extract_strided_slice %0 {offsets = [0, 510], sizes = [1, 2], strides = [1, 1]} : vector<1x512xf32> to vector<1x2xf32>
    %62 = vector.extract_strided_slice %0 {offsets = [0, 0], sizes = [1, 510], strides = [1, 1]} : vector<1x512xf32> to vector<1x510xf32>
    %63 = tpu.concatenate %61, %62 in 1 : vector<1x2xf32>, vector<1x510xf32> -> vector<1x512xf32>
    %c10 = arith.constant 10 : index
    %c0_32 = arith.constant 0 : index
    %64 = vector.load %arg1[%c10, %c0_32] : memref<25x512xf32, #tpu.memory_space<vmem>>, vector<1x512xf32>
    %65 = arith.mulf %63, %64 : vector<1x512xf32>
    %c10_33 = arith.constant 10 : index
    %c0_34 = arith.constant 0 : index
    %66 = vector.load %arg7[%c10_33, %c0_34] : memref<25x512xf32, #tpu.memory_space<vmem>>, vector<1x512xf32>
    tpu.vector_store %arg7[%c10_33, %c0_34], %65 {strides = array<i32>} : memref<25x512xf32, #tpu.memory_space<vmem>>, vector<1x512xf32>,
    %67 = vector.extract_strided_slice %0 {offsets = [0, 511], sizes = [1, 1], strides = [1, 1]} : vector<1x512xf32> to vector<1x1xf32>
    %68 = vector.extract_strided_slice %0 {offsets = [0, 0], sizes = [1, 511], strides = [1, 1]} : vector<1x512xf32> to vector<1x511xf32>
    %69 = tpu.concatenate %67, %68 in 1 : vector<1x1xf32>, vector<1x511xf32> -> vector<1x512xf32>
    %c11 = arith.constant 11 : index
    %c0_35 = arith.constant 0 : index
    %70 = vector.load %arg1[%c11, %c0_35] : memref<25x512xf32, #tpu.memory_space<vmem>>, vector<1x512xf32>
    %71 = arith.mulf %69, %70 : vector<1x512xf32>
    %c11_36 = arith.constant 11 : index
    %c0_37 = arith.constant 0 : index
    %72 = vector.load %arg7[%c11_36, %c0_37] : memref<25x512xf32, #tpu.memory_space<vmem>>, vector<1x512xf32>
    tpu.vector_store %arg7[%c11_36, %c0_37], %71 {strides = array<i32>} : memref<25x512xf32, #tpu.memory_space<vmem>>, vector<1x512xf32>,
    %c12 = arith.constant 12 : index
    %c0_38 = arith.constant 0 : index
    %73 = vector.load %arg1[%c12, %c0_38] : memref<25x512xf32, #tpu.memory_space<vmem>>, vector<1x512xf32>
    %74 = arith.mulf %0, %73 : vector<1x512xf32>
    %c12_39 = arith.constant 12 : index
    %c0_40 = arith.constant 0 : index
    %75 = vector.load %arg7[%c12_39, %c0_40] : memref<25x512xf32, #tpu.memory_space<vmem>>, vector<1x512xf32>
    tpu.vector_store %arg7[%c12_39, %c0_40], %74 {strides = array<i32>} : memref<25x512xf32, #tpu.memory_space<vmem>>, vector<1x512xf32>,
    %76 = vector.extract_strided_slice %0 {offsets = [0, 1], sizes = [1, 511], strides = [1, 1]} : vector<1x512xf32> to vector<1x511xf32>
    %77 = vector.extract_strided_slice %0 {offsets = [0, 0], sizes = [1, 1], strides = [1, 1]} : vector<1x512xf32> to vector<1x1xf32>
    %78 = tpu.concatenate %76, %77 in 1 : vector<1x511xf32>, vector<1x1xf32> -> vector<1x512xf32>
    %c13 = arith.constant 13 : index
    %c0_41 = arith.constant 0 : index
    %79 = vector.load %arg1[%c13, %c0_41] : memref<25x512xf32, #tpu.memory_space<vmem>>, vector<1x512xf32>
    %80 = arith.mulf %78, %79 : vector<1x512xf32>
    %c13_42 = arith.constant 13 : index
    %c0_43 = arith.constant 0 : index
    %81 = vector.load %arg7[%c13_42, %c0_43] : memref<25x512xf32, #tpu.memory_space<vmem>>, vector<1x512xf32>
    tpu.vector_store %arg7[%c13_42, %c0_43], %80 {strides = array<i32>} : memref<25x512xf32, #tpu.memory_space<vmem>>, vector<1x512xf32>,
    %82 = vector.extract_strided_slice %0 {offsets = [0, 2], sizes = [1, 510], strides = [1, 1]} : vector<1x512xf32> to vector<1x510xf32>
    %83 = vector.extract_strided_slice %0 {offsets = [0, 0], sizes = [1, 2], strides = [1, 1]} : vector<1x512xf32> to vector<1x2xf32>
    %84 = tpu.concatenate %82, %83 in 1 : vector<1x510xf32>, vector<1x2xf32> -> vector<1x512xf32>
    %c14 = arith.constant 14 : index
    %c0_44 = arith.constant 0 : index
    %85 = vector.load %arg1[%c14, %c0_44] : memref<25x512xf32, #tpu.memory_space<vmem>>, vector<1x512xf32>
    %86 = arith.mulf %84, %85 : vector<1x512xf32>
    %c14_45 = arith.constant 14 : index
    %c0_46 = arith.constant 0 : index
    %87 = vector.load %arg7[%c14_45, %c0_46] : memref<25x512xf32, #tpu.memory_space<vmem>>, vector<1x512xf32>
    tpu.vector_store %arg7[%c14_45, %c0_46], %86 {strides = array<i32>} : memref<25x512xf32, #tpu.memory_space<vmem>>, vector<1x512xf32>,
    %88 = vector.extract_strided_slice %0 {offsets = [0, 14], sizes = [1, 498], strides = [1, 1]} : vector<1x512xf32> to vector<1x498xf32>
    %89 = vector.extract_strided_slice %0 {offsets = [0, 0], sizes = [1, 14], strides = [1, 1]} : vector<1x512xf32> to vector<1x14xf32>
    %90 = tpu.concatenate %88, %89 in 1 : vector<1x498xf32>, vector<1x14xf32> -> vector<1x512xf32>
    %c15 = arith.constant 15 : index
    %c0_47 = arith.constant 0 : index
    %91 = vector.load %arg1[%c15, %c0_47] : memref<25x512xf32, #tpu.memory_space<vmem>>, vector<1x512xf32>
    %92 = arith.mulf %90, %91 : vector<1x512xf32>
    %c15_48 = arith.constant 15 : index
    %c0_49 = arith.constant 0 : index
    %93 = vector.load %arg7[%c15_48, %c0_49] : memref<25x512xf32, #tpu.memory_space<vmem>>, vector<1x512xf32>
    tpu.vector_store %arg7[%c15_48, %c0_49], %92 {strides = array<i32>} : memref<25x512xf32, #tpu.memory_space<vmem>>, vector<1x512xf32>,
    %94 = vector.extract_strided_slice %0 {offsets = [0, 15], sizes = [1, 497], strides = [1, 1]} : vector<1x512xf32> to vector<1x497xf32>
    %95 = vector.extract_strided_slice %0 {offsets = [0, 0], sizes = [1, 15], strides = [1, 1]} : vector<1x512xf32> to vector<1x15xf32>
    %96 = tpu.concatenate %94, %95 in 1 : vector<1x497xf32>, vector<1x15xf32> -> vector<1x512xf32>
    %c16 = arith.constant 16 : index
    %c0_50 = arith.constant 0 : index
    %97 = vector.load %arg1[%c16, %c0_50] : memref<25x512xf32, #tpu.memory_space<vmem>>, vector<1x512xf32>
    %98 = arith.mulf %96, %97 : vector<1x512xf32>
    %c16_51 = arith.constant 16 : index
    %c0_52 = arith.constant 0 : index
    %99 = vector.load %arg7[%c16_51, %c0_52] : memref<25x512xf32, #tpu.memory_space<vmem>>, vector<1x512xf32>
    tpu.vector_store %arg7[%c16_51, %c0_52], %98 {strides = array<i32>} : memref<25x512xf32, #tpu.memory_space<vmem>>, vector<1x512xf32>,
    %100 = vector.extract_strided_slice %0 {offsets = [0, 16], sizes = [1, 496], strides = [1, 1]} : vector<1x512xf32> to vector<1x496xf32>
    %101 = vector.extract_strided_slice %0 {offsets = [0, 0], sizes = [1, 16], strides = [1, 1]} : vector<1x512xf32> to vector<1x16xf32>
    %102 = tpu.concatenate %100, %101 in 1 : vector<1x496xf32>, vector<1x16xf32> -> vector<1x512xf32>
    %c17 = arith.constant 17 : index
    %c0_53 = arith.constant 0 : index
    %103 = vector.load %arg1[%c17, %c0_53] : memref<25x512xf32, #tpu.memory_space<vmem>>, vector<1x512xf32>
    %104 = arith.mulf %102, %103 : vector<1x512xf32>
    %c17_54 = arith.constant 17 : index
    %c0_55 = arith.constant 0 : index
    %105 = vector.load %arg7[%c17_54, %c0_55] : memref<25x512xf32, #tpu.memory_space<vmem>>, vector<1x512xf32>
    tpu.vector_store %arg7[%c17_54, %c0_55], %104 {strides = array<i32>} : memref<25x512xf32, #tpu.memory_space<vmem>>, vector<1x512xf32>,
    %106 = vector.extract_strided_slice %0 {offsets = [0, 17], sizes = [1, 495], strides = [1, 1]} : vector<1x512xf32> to vector<1x495xf32>
    %107 = vector.extract_strided_slice %0 {offsets = [0, 0], sizes = [1, 17], strides = [1, 1]} : vector<1x512xf32> to vector<1x17xf32>
    %108 = tpu.concatenate %106, %107 in 1 : vector<1x495xf32>, vector<1x17xf32> -> vector<1x512xf32>
    %c18 = arith.constant 18 : index
    %c0_56 = arith.constant 0 : index
    %109 = vector.load %arg1[%c18, %c0_56] : memref<25x512xf32, #tpu.memory_space<vmem>>, vector<1x512xf32>
    %110 = arith.mulf %108, %109 : vector<1x512xf32>
    %c18_57 = arith.constant 18 : index
    %c0_58 = arith.constant 0 : index
    %111 = vector.load %arg7[%c18_57, %c0_58] : memref<25x512xf32, #tpu.memory_space<vmem>>, vector<1x512xf32>
    tpu.vector_store %arg7[%c18_57, %c0_58], %110 {strides = array<i32>} : memref<25x512xf32, #tpu.memory_space<vmem>>, vector<1x512xf32>,
    %112 = vector.extract_strided_slice %0 {offsets = [0, 18], sizes = [1, 494], strides = [1, 1]} : vector<1x512xf32> to vector<1x494xf32>
    %113 = vector.extract_strided_slice %0 {offsets = [0, 0], sizes = [1, 18], strides = [1, 1]} : vector<1x512xf32> to vector<1x18xf32>
    %114 = tpu.concatenate %112, %113 in 1 : vector<1x494xf32>, vector<1x18xf32> -> vector<1x512xf32>
    %c19 = arith.constant 19 : index
    %c0_59 = arith.constant 0 : index
    %115 = vector.load %arg1[%c19, %c0_59] : memref<25x512xf32, #tpu.memory_space<vmem>>, vector<1x512xf32>
    %116 = arith.mulf %114, %115 : vector<1x512xf32>
    %c19_60 = arith.constant 19 : index
    %c0_61 = arith.constant 0 : index
    %117 = vector.load %arg7[%c19_60, %c0_61] : memref<25x512xf32, #tpu.memory_space<vmem>>, vector<1x512xf32>
    tpu.vector_store %arg7[%c19_60, %c0_61], %116 {strides = array<i32>} : memref<25x512xf32, #tpu.memory_space<vmem>>, vector<1x512xf32>,
    %118 = vector.extract_strided_slice %0 {offsets = [0, 30], sizes = [1, 482], strides = [1, 1]} : vector<1x512xf32> to vector<1x482xf32>
    %119 = vector.extract_strided_slice %0 {offsets = [0, 0], sizes = [1, 30], strides = [1, 1]} : vector<1x512xf32> to vector<1x30xf32>
    %120 = tpu.concatenate %118, %119 in 1 : vector<1x482xf32>, vector<1x30xf32> -> vector<1x512xf32>
    %c20 = arith.constant 20 : index
    %c0_62 = arith.constant 0 : index
    %121 = vector.load %arg1[%c20, %c0_62] : memref<25x512xf32, #tpu.memory_space<vmem>>, vector<1x512xf32>
    %122 = arith.mulf %120, %121 : vector<1x512xf32>
    %c20_63 = arith.constant 20 : index
    %c0_64 = arith.constant 0 : index
    %123 = vector.load %arg7[%c20_63, %c0_64] : memref<25x512xf32, #tpu.memory_space<vmem>>, vector<1x512xf32>
    tpu.vector_store %arg7[%c20_63, %c0_64], %122 {strides = array<i32>} : memref<25x512xf32, #tpu.memory_space<vmem>>, vector<1x512xf32>,
    %124 = vector.extract_strided_slice %0 {offsets = [0, 31], sizes = [1, 481], strides = [1, 1]} : vector<1x512xf32> to vector<1x481xf32>
    %125 = vector.extract_strided_slice %0 {offsets = [0, 0], sizes = [1, 31], strides = [1, 1]} : vector<1x512xf32> to vector<1x31xf32>
    %126 = tpu.concatenate %124, %125 in 1 : vector<1x481xf32>, vector<1x31xf32> -> vector<1x512xf32>
    %c21 = arith.constant 21 : index
    %c0_65 = arith.constant 0 : index
    %127 = vector.load %arg1[%c21, %c0_65] : memref<25x512xf32, #tpu.memory_space<vmem>>, vector<1x512xf32>
    %128 = arith.mulf %126, %127 : vector<1x512xf32>
    %c21_66 = arith.constant 21 : index
    %c0_67 = arith.constant 0 : index
    %129 = vector.load %arg7[%c21_66, %c0_67] : memref<25x512xf32, #tpu.memory_space<vmem>>, vector<1x512xf32>
    tpu.vector_store %arg7[%c21_66, %c0_67], %128 {strides = array<i32>} : memref<25x512xf32, #tpu.memory_space<vmem>>, vector<1x512xf32>,
    %130 = vector.extract_strided_slice %0 {offsets = [0, 32], sizes = [1, 480], strides = [1, 1]} : vector<1x512xf32> to vector<1x480xf32>
    %131 = vector.extract_strided_slice %0 {offsets = [0, 0], sizes = [1, 32], strides = [1, 1]} : vector<1x512xf32> to vector<1x32xf32>
    %132 = tpu.concatenate %130, %131 in 1 : vector<1x480xf32>, vector<1x32xf32> -> vector<1x512xf32>
    %c22 = arith.constant 22 : index
    %c0_68 = arith.constant 0 : index
    %133 = vector.load %arg1[%c22, %c0_68] : memref<25x512xf32, #tpu.memory_space<vmem>>, vector<1x512xf32>
    %134 = arith.mulf %132, %133 : vector<1x512xf32>
    %c22_69 = arith.constant 22 : index
    %c0_70 = arith.constant 0 : index
    %135 = vector.load %arg7[%c22_69, %c0_70] : memref<25x512xf32, #tpu.memory_space<vmem>>, vector<1x512xf32>
    tpu.vector_store %arg7[%c22_69, %c0_70], %134 {strides = array<i32>} : memref<25x512xf32, #tpu.memory_space<vmem>>, vector<1x512xf32>,
    %136 = vector.extract_strided_slice %0 {offsets = [0, 33], sizes = [1, 479], strides = [1, 1]} : vector<1x512xf32> to vector<1x479xf32>
    %137 = vector.extract_strided_slice %0 {offsets = [0, 0], sizes = [1, 33], strides = [1, 1]} : vector<1x512xf32> to vector<1x33xf32>
    %138 = tpu.concatenate %136, %137 in 1 : vector<1x479xf32>, vector<1x33xf32> -> vector<1x512xf32>
    %c23 = arith.constant 23 : index
    %c0_71 = arith.constant 0 : index
    %139 = vector.load %arg1[%c23, %c0_71] : memref<25x512xf32, #tpu.memory_space<vmem>>, vector<1x512xf32>
    %140 = arith.mulf %138, %139 : vector<1x512xf32>
    %c23_72 = arith.constant 23 : index
    %c0_73 = arith.constant 0 : index
    %141 = vector.load %arg7[%c23_72, %c0_73] : memref<25x512xf32, #tpu.memory_space<vmem>>, vector<1x512xf32>
    tpu.vector_store %arg7[%c23_72, %c0_73], %140 {strides = array<i32>} : memref<25x512xf32, #tpu.memory_space<vmem>>, vector<1x512xf32>,
    %142 = vector.extract_strided_slice %0 {offsets = [0, 34], sizes = [1, 478], strides = [1, 1]} : vector<1x512xf32> to vector<1x478xf32>
    %143 = vector.extract_strided_slice %0 {offsets = [0, 0], sizes = [1, 34], strides = [1, 1]} : vector<1x512xf32> to vector<1x34xf32>
    %144 = tpu.concatenate %142, %143 in 1 : vector<1x478xf32>, vector<1x34xf32> -> vector<1x512xf32>
    %c24 = arith.constant 24 : index
    %c0_74 = arith.constant 0 : index
    %145 = vector.load %arg1[%c24, %c0_74] : memref<25x512xf32, #tpu.memory_space<vmem>>, vector<1x512xf32>
    %146 = arith.mulf %144, %145 : vector<1x512xf32>
    %c24_75 = arith.constant 24 : index
    %c0_76 = arith.constant 0 : index
    %147 = vector.load %arg7[%c24_75, %c0_76] : memref<25x512xf32, #tpu.memory_space<vmem>>, vector<1x512xf32>
    tpu.vector_store %arg7[%c24_75, %c0_76], %146 {strides = array<i32>} : memref<25x512xf32, #tpu.memory_space<vmem>>, vector<1x512xf32>,
    %c0_77 = arith.constant 0 : index
    %c0_78 = arith.constant 0 : index
    %148 = vector.load %arg2[%c0_77, %c0_78] : memref<4x25xf32, #tpu.memory_space<vmem>>, vector<4x25xf32>
    %c0_79 = arith.constant 0 : index
    %c0_80 = arith.constant 0 : index
    %149 = vector.load %arg7[%c0_79, %c0_80] : memref<25x512xf32, #tpu.memory_space<vmem>>, vector<25x512xf32>
    %cst = arith.constant dense<0.000000e+00> : vector<4x512xf32>
    %150 = tpu.matmul %148, %149, %cst {dimension_numbers = #tpu.dot_dimension_numbers<[1], [0], [0], [1], [0, 0, 1, 1], [], []>} : vector<4x25xf32>, vector<25x512xf32>, vector<4x512xf32> -> vector<4x512xf32>
    %c0_81 = arith.constant 0 : index
    %c0_82 = arith.constant 0 : index
    %151 = vector.load %arg3[%c0_81, %c0_82] : memref<4x1xf32, #tpu.memory_space<vmem>>, vector<4x1xf32>
    %152 = vector.broadcast %151 : vector<4x1xf32> to vector<4x512xf32>
    %153 = arith.addf %150, %152 : vector<4x512xf32>
    %cst_83 = arith.constant 0.000000e+00 : f32
    %154 = vector.broadcast %cst_83 : f32 to vector<4x512xf32>
    %155 = arith.maximumf %153, %154 : vector<4x512xf32>
    %156 = vector.extract_strided_slice %155 {offsets = [0, 0], sizes = [1, 256], strides = [1, 1]} : vector<4x512xf32> to vector<1x256xf32>
    %c0_84 = arith.constant 0 : index
    %c0_85 = arith.constant 0 : index
    %157 = vector.load %arg8[%c0_84, %c0_85] : memref<2x1024xf32, #tpu.memory_space<vmem>>, vector<1x256xf32>
    tpu.vector_store %arg8[%c0_84, %c0_85], %156 {strides = array<i32>} : memref<2x1024xf32, #tpu.memory_space<vmem>>, vector<1x256xf32>,
    %158 = vector.extract_strided_slice %155 {offsets = [1, 0], sizes = [1, 256], strides = [1, 1]} : vector<4x512xf32> to vector<1x256xf32>
    %c0_86 = arith.constant 0 : index
    %c256 = arith.constant 256 : index
    %159 = vector.load %arg8[%c0_86, %c256] : memref<2x1024xf32, #tpu.memory_space<vmem>>, vector<1x256xf32>
    tpu.vector_store %arg8[%c0_86, %c256], %158 {strides = array<i32>} : memref<2x1024xf32, #tpu.memory_space<vmem>>, vector<1x256xf32>,
    %160 = vector.extract_strided_slice %155 {offsets = [2, 0], sizes = [1, 256], strides = [1, 1]} : vector<4x512xf32> to vector<1x256xf32>
    %c0_87 = arith.constant 0 : index
    %c512 = arith.constant 512 : index
    %161 = vector.load %arg8[%c0_87, %c512] : memref<2x1024xf32, #tpu.memory_space<vmem>>, vector<1x256xf32>
    tpu.vector_store %arg8[%c0_87, %c512], %160 {strides = array<i32>} : memref<2x1024xf32, #tpu.memory_space<vmem>>, vector<1x256xf32>,
    %162 = vector.extract_strided_slice %155 {offsets = [3, 0], sizes = [1, 256], strides = [1, 1]} : vector<4x512xf32> to vector<1x256xf32>
    %c0_88 = arith.constant 0 : index
    %c768 = arith.constant 768 : index
    %163 = vector.load %arg8[%c0_88, %c768] : memref<2x1024xf32, #tpu.memory_space<vmem>>, vector<1x256xf32>
    tpu.vector_store %arg8[%c0_88, %c768], %162 {strides = array<i32>} : memref<2x1024xf32, #tpu.memory_space<vmem>>, vector<1x256xf32>,
    %164 = vector.extract_strided_slice %155 {offsets = [0, 256], sizes = [1, 256], strides = [1, 1]} : vector<4x512xf32> to vector<1x256xf32>
    %c1_89 = arith.constant 1 : index
    %c0_90 = arith.constant 0 : index
    %165 = vector.load %arg8[%c1_89, %c0_90] : memref<2x1024xf32, #tpu.memory_space<vmem>>, vector<1x256xf32>
    tpu.vector_store %arg8[%c1_89, %c0_90], %164 {strides = array<i32>} : memref<2x1024xf32, #tpu.memory_space<vmem>>, vector<1x256xf32>,
    %166 = vector.extract_strided_slice %155 {offsets = [1, 256], sizes = [1, 256], strides = [1, 1]} : vector<4x512xf32> to vector<1x256xf32>
    %c1_91 = arith.constant 1 : index
    %c256_92 = arith.constant 256 : index
    %167 = vector.load %arg8[%c1_91, %c256_92] : memref<2x1024xf32, #tpu.memory_space<vmem>>, vector<1x256xf32>
    tpu.vector_store %arg8[%c1_91, %c256_92], %166 {strides = array<i32>} : memref<2x1024xf32, #tpu.memory_space<vmem>>, vector<1x256xf32>,
    %168 = vector.extract_strided_slice %155 {offsets = [2, 256], sizes = [1, 256], strides = [1, 1]} : vector<4x512xf32> to vector<1x256xf32>
    %c1_93 = arith.constant 1 : index
    %c512_94 = arith.constant 512 : index
    %169 = vector.load %arg8[%c1_93, %c512_94] : memref<2x1024xf32, #tpu.memory_space<vmem>>, vector<1x256xf32>
    tpu.vector_store %arg8[%c1_93, %c512_94], %168 {strides = array<i32>} : memref<2x1024xf32, #tpu.memory_space<vmem>>, vector<1x256xf32>,
    %170 = vector.extract_strided_slice %155 {offsets = [3, 256], sizes = [1, 256], strides = [1, 1]} : vector<4x512xf32> to vector<1x256xf32>
    %c1_95 = arith.constant 1 : index
    %c768_96 = arith.constant 768 : index
    %171 = vector.load %arg8[%c1_95, %c768_96] : memref<2x1024xf32, #tpu.memory_space<vmem>>, vector<1x256xf32>
    tpu.vector_store %arg8[%c1_95, %c768_96], %170 {strides = array<i32>} : memref<2x1024xf32, #tpu.memory_space<vmem>>, vector<1x256xf32>,
    %c0_97 = arith.constant 0 : index
    %c0_98 = arith.constant 0 : index
    %172 = vector.load %arg8[%c0_97, %c0_98] : memref<2x1024xf32, #tpu.memory_space<vmem>>, vector<2x1024xf32>
    %c0_99 = arith.constant 0 : index
    %c0_100 = arith.constant 0 : index
    %173 = vector.load %arg4[%c0_99, %c0_100] : memref<8x1024xf32, #tpu.memory_space<vmem>>, vector<8x1024xf32>
    %cst_101 = arith.constant dense<0.000000e+00> : vector<2x8xf32>
    %174 = tpu.matmul %172, %173, %cst_101 {dimension_numbers = #tpu.dot_dimension_numbers<[1], [1], [0], [0], [0, 0, 1, 0], [], []>} : vector<2x1024xf32>, vector<8x1024xf32>, vector<2x8xf32> -> vector<2x8xf32>
    %c0_102 = arith.constant 0 : index
    %c0_103 = arith.constant 0 : index
    %175 = vector.load %arg5[%c0_102, %c0_103] : memref<1x8xf32, #tpu.memory_space<vmem>>, vector<1x8xf32>
    %176 = vector.broadcast %175 : vector<1x8xf32> to vector<2x8xf32>
    %177 = arith.addf %174, %176 : vector<2x8xf32>
    %c0_104 = arith.constant 0 : index
    %c0_105 = arith.constant 0 : index
    %178 = vector.load %arg6[%c0_104, %c0_105] : memref<2x8xf32, #tpu.memory_space<vmem>>, vector<2x8xf32>
    tpu.vector_store %arg6[%c0_104, %c0_105], %177 {strides = array<i32>} : memref<2x8xf32, #tpu.memory_space<vmem>>, vector<2x8xf32>,
    return
  }
}

</mosaic_0001>

<llo_original>
// kernel: tpu_custom_call.1
$region0: #{tpu_custom_call.1}
  #allocation0 [shape = 'u32[]', space=smem, size = 0x4, offset = 0x4, fixed_abs, tag = 'smem constant byte address 0x4 - core index']
  #allocation1 [shape = 'u32[144,128]{1,0:T(1,128)}', space=vmem, size = 0x12000, scoped, tag = 'internal scratch']
  #allocation2 [shape = 'f32[25,512]{1,0:T(8,128)}', space=vmem, size = 0x10000, scoped, tag = 'scratch operand']
  #allocation3 [shape = 'f32[2,1024]{1,0:T(2,128)}', space=vmem, size = 0x2000, scoped, tag = 'scratch operand']
  %s0 = inlined_call_operand.vmem [shape: f32[1,512], index: 0, kind: input, shape index: {}]
  %s1 = inlined_call_operand.hbm [shape: f32[25,512], index: 1, kind: input, shape index: {}]
  %s2 = inlined_call_operand.vmem [shape: f32[4,25], index: 2, kind: input, shape index: {}]
  %s3 = inlined_call_operand.vmem [shape: f32[4,1], index: 3, kind: input, shape index: {}]
  %s4 = inlined_call_operand.hbm [shape: f32[8,1024], index: 4, kind: input, shape index: {}]
  %s5 = inlined_call_operand.vmem [shape: f32[1,8], index: 5, kind: input, shape index: {}]
  %s6 = inlined_call_operand.hbm [shape: f32[2,8], index: 6, kind: output, shape index: {}]
  %s7 = sld [smem:[#allocation0]]
  $region42: #{tpu_custom_call.1} parent=0
    _
  %s9 = ssub.s32 1, %s7
  %s10 = scalar_select 0, %s9, %s7
  $region1: #{tpu_custom_call.1} parent=0
    #allocation4 [shape = 'u8[65536]{0}', space=vmem, size = 0x10000, scoped, tag = 'input window, operand 1, single buffered']
    #allocation5 [shape = 's32[1]{0}', space=sflag, size = 0x4, scoped, tag = 'scoped memory for tpu_custom_call.1']
    #allocation6 [shape = 's32[1]{0}', space=sflag, size = 0x4, scoped, tag = 'scoped memory for tpu_custom_call.1']
    #allocation7 [shape = 'u8[32768]{0}', space=vmem, size = 0x8000, scoped, tag = 'input window, operand 4, single buffered']
    #allocation8 [shape = 's32[1]{0}', space=sflag, size = 0x4, scoped, tag = 'scoped memory for tpu_custom_call.1']
    #allocation9 [shape = 'u8[1024]{0}', space=vmem, size = 0x400, scoped, tag = 'output window, operand 0, single buffered']
    %11 = vsyncpa [#allocation5], 0
    %12 = vsyncpa [#allocation8], 0
    %13 = vsyncpa [#allocation6], 0
    // Predicated region
    $region2: #{tpu_custom_call.1} parent=1 // pred_check
      _
    $region3: #{tpu_custom_call.1} parent=1 // pred_check_branch
      %15 = sbr.rel (0) target = $region5
    $region4: #{tpu_custom_call.1} parent=1 // pred_region
      _
    $region5: #{tpu_custom_call.1} parent=1 // pred_fallthru
      _
    // Predicated region
    $region6: #{tpu_custom_call.1} parent=1 // pred_check
      _
    $region7: #{tpu_custom_call.1} parent=1 // pred_check_branch
      %17 = sbr.rel (0) target = $region9
    $region8: #{tpu_custom_call.1} parent=1 // pred_region
      %s19 = ssub.s32 2048, 2048
      %20 = vsyncadd [#allocation5], %s19
      %s21 = sshll.u32 [#allocation4], 4
      %s22 = int_to_ptr.vmem [resolvable:$true] %s21
      %27 = dma.hbm_to_vmem [thread:$0]  %s1, 2048, %s22, [#allocation5], 512, 512, 32
    $region9: #{tpu_custom_call.1} parent=1 // pred_fallthru
      _
    // Predicated region
    $region10: #{tpu_custom_call.1} parent=1 // pred_check
      _
    $region11: #{tpu_custom_call.1} parent=1 // pred_check_branch
      %29 = sbr.rel (0) target = $region13
    $region12: #{tpu_custom_call.1} parent=1 // pred_region
      _
    $region13: #{tpu_custom_call.1} parent=1 // pred_fallthru
      _
    // Predicated region
    $region14: #{tpu_custom_call.1} parent=1 // pred_check
      _
    $region15: #{tpu_custom_call.1} parent=1 // pred_check_branch
      %31 = sbr.rel (0) target = $region17
    $region16: #{tpu_custom_call.1} parent=1 // pred_region
      _
    $region17: #{tpu_custom_call.1} parent=1 // pred_fallthru
      _
    // Predicated region
    $region18: #{tpu_custom_call.1} parent=1 // pred_check
      _
    $region19: #{tpu_custom_call.1} parent=1 // pred_check_branch
      %33 = sbr.rel (0) target = $region21
    $region20: #{tpu_custom_call.1} parent=1 // pred_region
      %s35 = ssub.s32 1024, 1024
      %36 = vsyncadd [#allocation8], %s35
      %s38 = sshll.u32 [#allocation7], 4
      %s39 = int_to_ptr.vmem [resolvable:$true] %s38
      %41 = dma.hbm_to_vmem [thread:$0]  %s4, 1024, %s39, [#allocation8]
    $region21: #{tpu_custom_call.1} parent=1 // pred_fallthru
      _
    // Predicated region
    $region22: #{tpu_custom_call.1} parent=1 // pred_check
      _
    $region23: #{tpu_custom_call.1} parent=1 // pred_check_branch
      %43 = sbr.rel (0) target = $region25
    $region24: #{tpu_custom_call.1} parent=1 // pred_region
      _
    $region25: #{tpu_custom_call.1} parent=1 // pred_fallthru
      _
    // Predicated region
    $region26: #{tpu_custom_call.1} parent=1 // pred_check
      _
    $region27: #{tpu_custom_call.1} parent=1 // pred_check_branch
      %45 = sbr.rel (0) target = $region29
    $region28: #{tpu_custom_call.1} parent=1 // pred_region
      %46 = dma.done [#allocation5], 2048
    $region29: #{tpu_custom_call.1} parent=1 // pred_fallthru
      _
    // Predicated region
    $region30: #{tpu_custom_call.1} parent=1 // pred_check
      _
    $region31: #{tpu_custom_call.1} parent=1 // pred_check_branch
      %48 = sbr.rel (0) target = $region33
    $region32: #{tpu_custom_call.1} parent=1 // pred_region
      %49 = dma.done [#allocation8], 1024
    $region33: #{tpu_custom_call.1} parent=1 // pred_fallthru
      _
    %v50 = vld [vmem:[%s0] sm:$0xf]
    %v52 = vlaneseq
    %v53 = vshrl.u32 %v52, 7
    %v54 = vsub.s32 3, %v53
    %v55 = vrot.slane %v50, %v54
    %56 = vrot.lane.b32.xlu0 %v55, 34
    %v57 = vpop.permute.xlu0 %56
    %v59 = vlaneseq
    %v60 = vshrl.u32 %v59, 7
    %v61 = vsub.s32 0, %v60
    %v62 = vrot.slane %v50, %v61
    %v63 = vlaneseq
    %v64 = vshrl.u32 %v63, 7
    %v65 = vsub.s32 1, %v64
    %v66 = vrot.slane %v50, %v65
    %v67 = vlaneseq
    %v68 = vshrl.u32 %v67, 7
    %v69 = vsub.s32 2, %v68
    %v70 = vrot.slane %v50, %v69
    %71 = vrot.lane.b32.xlu0 %v62, 34
    %v72 = vpop.permute.xlu0 %71
    %73 = vrot.lane.b32.xlu0 %v66, 34
    %v74 = vpop.permute.xlu0 %73
    %75 = vrot.lane.b32.xlu0 %v70, 34
    %v76 = vpop.permute.xlu0 %75
    %vm77 = vcmask 277504
    %v78 = vsel %vm77, %v72, %v74
    %v79 = vsel %vm77, %v74, %v76
    %v80 = vsel %vm77, %v76, %v57
    %v85 = vsel %vm77, %v57, %v72
    %v86 = vld [vmem:[#allocation4] ss:$8 sm:$0xf]
    %v88 = vlaneseq
    %v89 = vshrl.u32 %v88, 7
    %v90 = vsub.s32 0, %v89
    %v91 = vrot.slane %v86, %v90
    %v92 = vlaneseq
    %v93 = vshrl.u32 %v92, 7
    %v94 = vsub.s32 1, %v93
    %v95 = vrot.slane %v86, %v94
    %v96 = vlaneseq
    %v97 = vshrl.u32 %v96, 7
    %v98 = vsub.s32 2, %v97
    %v99 = vrot.slane %v86, %v98
    %v100 = vlaneseq
    %v101 = vshrl.u32 %v100, 7
    %v102 = vsub.s32 3, %v101
    %v103 = vrot.slane %v86, %v102
    %v108 = vmul.f32 %v85, %v91
    %v109 = vmul.f32 %v78, %v95
    %v110 = vmul.f32 %v79, %v99
    %v111 = vmul.f32 %v80, %v103
    %v116 = vcombine.low %v108, %v109
    %v117 = vcombine.low %v110, %v111
    %v119 = vunpack.c.l.s4 1966171168
    %v120 = vunpack.c.0.s8 %v119
    %v121 = vlaneseq
    %v122 = vshrl.u32 %v121, 7
    %v123 = vsub.s32 %v120, %v122
    %v124 = vrot.slane %v116, %v123
    %v126 = vunpack.c.l.s4 1966171168
    %v127 = vunpack.c.0.s8 %v126
    %v128 = vlaneseq
    %v129 = vshrl.u32 %v128, 7
    %v130 = vsub.s32 %v127, %v129
    %v131 = vrot.slane %v117, %v130
    %v132 = vcombine.low %v124, %v131
    %v134 = vunpack.c.l.s4 1966171168
    %v135 = vunpack.c.0.s8 %v134
    %v136 = vlaneseq
    %v137 = vshrl.u32 %v136, 7
    %v138 = vsub.s32 %v135, %v137
    %v139 = vrot.slane %v132, %v138
    %v141 = vlaneseq
    %vm142 = vcmp.ge.s32.totalorder %v141, 0
    %vm143 = vcmp.lt.s32.totalorder %v141, 512
    %vm144 = vmand %vm142, %vm143
    %145 = vst.msk [vmem:[#allocation2] ss:$8 sm:$0xf] %vm144, %v139
    %146 = vst.msk [vmem:[#allocation2] ss:$8 sm:$0x0] %vm144, %v139
    %147 = vrot.lane.b32.xlu0 %v55, 33
    %v148 = vpop.permute.xlu0 %147
    %150 = vrot.lane.b32.xlu0 %v62, 33
    %v151 = vpop.permute.xlu0 %150
    %152 = vrot.lane.b32.xlu0 %v66, 33
    %v153 = vpop.permute.xlu0 %152
    %154 = vrot.lane.b32.xlu0 %v70, 33
    %v155 = vpop.permute.xlu0 %154
    %vm156 = vcmask 269312
    %v157 = vsel %vm156, %v151, %v153
    %v158 = vsel %vm156, %v153, %v155
    %v159 = vsel %vm156, %v155, %v148
    %v164 = vsel %vm156, %v148, %v151
    %s165 = scalar_lea.vmem [#allocation4], 1
    %v166 = vld [vmem:[%s165] ss:$8 sm:$0xf]
    %v168 = vlaneseq
    %v169 = vshrl.u32 %v168, 7
    %v170 = vsub.s32 0, %v169
    %v171 = vrot.slane %v166, %v170
    %v172 = vlaneseq
    %v173 = vshrl.u32 %v172, 7
    %v174 = vsub.s32 1, %v173
    %v175 = vrot.slane %v166, %v174
    %v176 = vlaneseq
    %v177 = vshrl.u32 %v176, 7
    %v178 = vsub.s32 2, %v177
    %v179 = vrot.slane %v166, %v178
    %v180 = vlaneseq
    %v181 = vshrl.u32 %v180, 7
    %v182 = vsub.s32 3, %v181
    %v183 = vrot.slane %v166, %v182
    %v188 = vmul.f32 %v164, %v171
    %v189 = vmul.f32 %v157, %v175
    %v190 = vmul.f32 %v158, %v179
    %v191 = vmul.f32 %v159, %v183
    %v196 = vcombine.low %v188, %v189
    %v197 = vcombine.low %v190, %v191
    %v199 = vunpack.c.l.s4 1966171168
    %v200 = vunpack.c.0.s8 %v199
    %v201 = vlaneseq
    %v202 = vshrl.u32 %v201, 7
    %v203 = vsub.s32 %v200, %v202
    %v204 = vrot.slane %v196, %v203
    %v206 = vunpack.c.l.s4 1966171168
    %v207 = vunpack.c.0.s8 %v206
    %v208 = vlaneseq
    %v209 = vshrl.u32 %v208, 7
    %v210 = vsub.s32 %v207, %v209
    %v211 = vrot.slane %v197, %v210
    %v212 = vcombine.low %v204, %v211
    %v214 = vunpack.c.l.s4 1966171168
    %v215 = vunpack.c.0.s8 %v214
    %v216 = vlaneseq
    %v217 = vshrl.u32 %v216, 7
    %v218 = vsub.s32 %v215, %v217
    %v219 = vrot.slane %v212, %v218
    %s221 = scalar_lea.vmem [#allocation2], 1
    %222 = vst.msk [vmem:[%s221] ss:$8 sm:$0xf] %vm144, %v219
    %223 = vst.msk [vmem:[%s221] ss:$8 sm:$0x0] %vm144, %v219
    %224 = vrot.lane.b32.xlu0 %v55, 32
    %v225 = vpop.permute.xlu0 %224
    %227 = vrot.lane.b32.xlu0 %v62, 32
    %v228 = vpop.permute.xlu0 %227
    %229 = vrot.lane.b32.xlu0 %v66, 32
    %v230 = vpop.permute.xlu0 %229
    %231 = vrot.lane.b32.xlu0 %v70, 32
    %v232 = vpop.permute.xlu0 %231
    %vm233 = vcmask 261120
    %v234 = vsel %vm233, %v228, %v230
    %v235 = vsel %vm233, %v230, %v232
    %v236 = vsel %vm233, %v232, %v225
    %v241 = vsel %vm233, %v225, %v228
    %s242 = scalar_lea.vmem [#allocation4], 2
    %v243 = vld [vmem:[%s242] ss:$8 sm:$0xf]
    %v245 = vlaneseq
    %v246 = vshrl.u32 %v245, 7
    %v247 = vsub.s32 0, %v246
    %v248 = vrot.slane %v243, %v247
    %v249 = vlaneseq
    %v250 = vshrl.u32 %v249, 7
    %v251 = vsub.s32 1, %v250
    %v252 = vrot.slane %v243, %v251
    %v253 = vlaneseq
    %v254 = vshrl.u32 %v253, 7
    %v255 = vsub.s32 2, %v254
    %v256 = vrot.slane %v243, %v255
    %v257 = vlaneseq
    %v258 = vshrl.u32 %v257, 7
    %v259 = vsub.s32 3, %v258
    %v260 = vrot.slane %v243, %v259
    %v265 = vmul.f32 %v241, %v248
    %v266 = vmul.f32 %v234, %v252
    %v267 = vmul.f32 %v235, %v256
    %v268 = vmul.f32 %v236, %v260
    %v273 = vcombine.low %v265, %v266
    %v274 = vcombine.low %v267, %v268
    %v276 = vunpack.c.l.s4 1966171168
    %v277 = vunpack.c.0.s8 %v276
    %v278 = vlaneseq
    %v279 = vshrl.u32 %v278, 7
    %v280 = vsub.s32 %v277, %v279
    %v281 = vrot.slane %v273, %v280
    %v283 = vunpack.c.l.s4 1966171168
    %v284 = vunpack.c.0.s8 %v283
    %v285 = vlaneseq
    %v286 = vshrl.u32 %v285, 7
    %v287 = vsub.s32 %v284, %v286
    %v288 = vrot.slane %v274, %v287
    %v289 = vcombine.low %v281, %v288
    %v291 = vunpack.c.l.s4 1966171168
    %v292 = vunpack.c.0.s8 %v291
    %v293 = vlaneseq
    %v294 = vshrl.u32 %v293, 7
    %v295 = vsub.s32 %v292, %v294
    %v296 = vrot.slane %v289, %v295
    %s298 = scalar_lea.vmem [#allocation2], 2
    %299 = vst.msk [vmem:[%s298] ss:$8 sm:$0xf] %vm144, %v296
    %300 = vst.msk [vmem:[%s298] ss:$8 sm:$0x0] %vm144, %v296
    %301 = vrot.lane.b32.xlu0 %v55, 31
    %v302 = vpop.permute.xlu0 %301
    %304 = vrot.lane.b32.xlu0 %v62, 31
    %v305 = vpop.permute.xlu0 %304
    %306 = vrot.lane.b32.xlu0 %v66, 31
    %v307 = vpop.permute.xlu0 %306
    %308 = vrot.lane.b32.xlu0 %v70, 31
    %v309 = vpop.permute.xlu0 %308
    %vm310 = vcmask 252928
    %v311 = vsel %vm310, %v305, %v307
    %v312 = vsel %vm310, %v307, %v309
    %v313 = vsel %vm310, %v309, %v302
    %v318 = vsel %vm310, %v302, %v305
    %s319 = scalar_lea.vmem [#allocation4], 3
    %v320 = vld [vmem:[%s319] ss:$8 sm:$0xf]
    %v322 = vlaneseq
    %v323 = vshrl.u32 %v322, 7
    %v324 = vsub.s32 0, %v323
    %v325 = vrot.slane %v320, %v324
    %v326 = vlaneseq
    %v327 = vshrl.u32 %v326, 7
    %v328 = vsub.s32 1, %v327
    %v329 = vrot.slane %v320, %v328
    %v330 = vlaneseq
    %v331 = vshrl.u32 %v330, 7
    %v332 = vsub.s32 2, %v331
    %v333 = vrot.slane %v320, %v332
    %v334 = vlaneseq
    %v335 = vshrl.u32 %v334, 7
    %v336 = vsub.s32 3, %v335
    %v337 = vrot.slane %v320, %v336
    %v342 = vmul.f32 %v318, %v325
    %v343 = vmul.f32 %v311, %v329
    %v344 = vmul.f32 %v312, %v333
    %v345 = vmul.f32 %v313, %v337
    %v350 = vcombine.low %v342, %v343
    %v351 = vcombine.low %v344, %v345
    %v353 = vunpack.c.l.s4 1966171168
    %v354 = vunpack.c.0.s8 %v353
    %v355 = vlaneseq
    %v356 = vshrl.u32 %v355, 7
    %v357 = vsub.s32 %v354, %v356
    %v358 = vrot.slane %v350, %v357
    %v360 = vunpack.c.l.s4 1966171168
    %v361 = vunpack.c.0.s8 %v360
    %v362 = vlaneseq
    %v363 = vshrl.u32 %v362, 7
    %v364 = vsub.s32 %v361, %v363
    %v365 = vrot.slane %v351, %v364
    %v366 = vcombine.low %v358, %v365
    %v368 = vunpack.c.l.s4 1966171168
    %v369 = vunpack.c.0.s8 %v368
    %v370 = vlaneseq
    %v371 = vshrl.u32 %v370, 7
    %v372 = vsub.s32 %v369, %v371
    %v373 = vrot.slane %v366, %v372
    %s375 = scalar_lea.vmem [#allocation2], 3
    %376 = vst.msk [vmem:[%s375] ss:$8 sm:$0xf] %vm144, %v373
    %377 = vst.msk [vmem:[%s375] ss:$8 sm:$0x0] %vm144, %v373
    %378 = vrot.lane.b32.xlu0 %v55, 30
    %v379 = vpop.permute.xlu0 %378
    %381 = vrot.lane.b32.xlu0 %v62, 30
    %v382 = vpop.permute.xlu0 %381
    %383 = vrot.lane.b32.xlu0 %v66, 30
    %v384 = vpop.permute.xlu0 %383
    %385 = vrot.lane.b32.xlu0 %v70, 30
    %v386 = vpop.permute.xlu0 %385
    %vm387 = vcmask 244736
    %v388 = vsel %vm387, %v382, %v384
    %v389 = vsel %vm387, %v384, %v386
    %v390 = vsel %vm387, %v386, %v379
    %v395 = vsel %vm387, %v379, %v382
    %s396 = scalar_lea.vmem [#allocation4], 4
    %v397 = vld [vmem:[%s396] ss:$8 sm:$0xf]
    %v399 = vlaneseq
    %v400 = vshrl.u32 %v399, 7
    %v401 = vsub.s32 0, %v400
    %v402 = vrot.slane %v397, %v401
    %v403 = vlaneseq
    %v404 = vshrl.u32 %v403, 7
    %v405 = vsub.s32 1, %v404
    %v406 = vrot.slane %v397, %v405
    %v407 = vlaneseq
    %v408 = vshrl.u32 %v407, 7
    %v409 = vsub.s32 2, %v408
    %v410 = vrot.slane %v397, %v409
    %v411 = vlaneseq
    %v412 = vshrl.u32 %v411, 7
    %v413 = vsub.s32 3, %v412
    %v414 = vrot.slane %v397, %v413
    %v419 = vmul.f32 %v395, %v402
    %v420 = vmul.f32 %v388, %v406
    %v421 = vmul.f32 %v389, %v410
    %v422 = vmul.f32 %v390, %v414
    %v427 = vcombine.low %v419, %v420
    %v428 = vcombine.low %v421, %v422
    %v430 = vunpack.c.l.s4 1966171168
    %v431 = vunpack.c.0.s8 %v430
    %v432 = vlaneseq
    %v433 = vshrl.u32 %v432, 7
    %v434 = vsub.s32 %v431, %v433
    %v435 = vrot.slane %v427, %v434
    %v437 = vunpack.c.l.s4 1966171168
    %v438 = vunpack.c.0.s8 %v437
    %v439 = vlaneseq
    %v440 = vshrl.u32 %v439, 7
    %v441 = vsub.s32 %v438, %v440
    %v442 = vrot.slane %v428, %v441
    %v443 = vcombine.low %v435, %v442
    %v445 = vunpack.c.l.s4 1966171168
    %v446 = vunpack.c.0.s8 %v445
    %v447 = vlaneseq
    %v448 = vshrl.u32 %v447, 7
    %v449 = vsub.s32 %v446, %v448
    %v450 = vrot.slane %v443, %v449
    %s452 = scalar_lea.vmem [#allocation2], 4
    %453 = vst.msk [vmem:[%s452] ss:$8 sm:$0xf] %vm144, %v450
    %454 = vst.msk [vmem:[%s452] ss:$8 sm:$0x0] %vm144, %v450
    %455 = vrot.lane.b32.xlu0 %v55, 18
    %v456 = vpop.permute.xlu0 %455
    %458 = vrot.lane.b32.xlu0 %v62, 18
    %v459 = vpop.permute.xlu0 %458
    %460 = vrot.lane.b32.xlu0 %v66, 18
    %v461 = vpop.permute.xlu0 %460
    %462 = vrot.lane.b32.xlu0 %v70, 18
    %v463 = vpop.permute.xlu0 %462
    %vm464 = vcmask 146432
    %v465 = vsel %vm464, %v459, %v461
    %v466 = vsel %vm464, %v461, %v463
    %v467 = vsel %vm464, %v463, %v456
    %v472 = vsel %vm464, %v456, %v459
    %s473 = scalar_lea.vmem [#allocation4], 5
    %v474 = vld [vmem:[%s473] ss:$8 sm:$0xf]
    %v476 = vlaneseq
    %v477 = vshrl.u32 %v476, 7
    %v478 = vsub.s32 0, %v477
    %v479 = vrot.slane %v474, %v478
    %v480 = vlaneseq
    %v481 = vshrl.u32 %v480, 7
    %v482 = vsub.s32 1, %v481
    %v483 = vrot.slane %v474, %v482
    %v484 = vlaneseq
    %v485 = vshrl.u32 %v484, 7
    %v486 = vsub.s32 2, %v485
    %v487 = vrot.slane %v474, %v486
    %v488 = vlaneseq
    %v489 = vshrl.u32 %v488, 7
    %v490 = vsub.s32 3, %v489
    %v491 = vrot.slane %v474, %v490
    %v496 = vmul.f32 %v472, %v479
    %v497 = vmul.f32 %v465, %v483
    %v498 = vmul.f32 %v466, %v487
    %v499 = vmul.f32 %v467, %v491
    %v504 = vcombine.low %v496, %v497
    %v505 = vcombine.low %v498, %v499
    %v507 = vunpack.c.l.s4 1966171168
    %v508 = vunpack.c.0.s8 %v507
    %v509 = vlaneseq
    %v510 = vshrl.u32 %v509, 7
    %v511 = vsub.s32 %v508, %v510
    %v512 = vrot.slane %v504, %v511
    %v514 = vunpack.c.l.s4 1966171168
    %v515 = vunpack.c.0.s8 %v514
    %v516 = vlaneseq
    %v517 = vshrl.u32 %v516, 7
    %v518 = vsub.s32 %v515, %v517
    %v519 = vrot.slane %v505, %v518
    %v520 = vcombine.low %v512, %v519
    %v522 = vunpack.c.l.s4 1966171168
    %v523 = vunpack.c.0.s8 %v522
    %v524 = vlaneseq
    %v525 = vshrl.u32 %v524, 7
    %v526 = vsub.s32 %v523, %v525
    %v527 = vrot.slane %v520, %v526
    %s529 = scalar_lea.vmem [#allocation2], 5
    %530 = vst.msk [vmem:[%s529] ss:$8 sm:$0xf] %vm144, %v527
    %531 = vst.msk [vmem:[%s529] ss:$8 sm:$0x0] %vm144, %v527
    %532 = vrot.lane.b32.xlu0 %v55, 17
    %v533 = vpop.permute.xlu0 %532
    %535 = vrot.lane.b32.xlu0 %v62, 17
    %v536 = vpop.permute.xlu0 %535
    %537 = vrot.lane.b32.xlu0 %v66, 17
    %v538 = vpop.permute.xlu0 %537
    %539 = vrot.lane.b32.xlu0 %v70, 17
    %v540 = vpop.permute.xlu0 %539
    %vm541 = vcmask 138240
    %v542 = vsel %vm541, %v536, %v538
    %v543 = vsel %vm541, %v538, %v540
    %v544 = vsel %vm541, %v540, %v533
    %v549 = vsel %vm541, %v533, %v536
    %s550 = scalar_lea.vmem [#allocation4], 6
    %v551 = vld [vmem:[%s550] ss:$8 sm:$0xf]
    %v553 = vlaneseq
    %v554 = vshrl.u32 %v553, 7
    %v555 = vsub.s32 0, %v554
    %v556 = vrot.slane %v551, %v555
    %v557 = vlaneseq
    %v558 = vshrl.u32 %v557, 7
    %v559 = vsub.s32 1, %v558
    %v560 = vrot.slane %v551, %v559
    %v561 = vlaneseq
    %v562 = vshrl.u32 %v561, 7
    %v563 = vsub.s32 2, %v562
    %v564 = vrot.slane %v551, %v563
    %v565 = vlaneseq
    %v566 = vshrl.u32 %v565, 7
    %v567 = vsub.s32 3, %v566
    %v568 = vrot.slane %v551, %v567
    %v573 = vmul.f32 %v549, %v556
    %v574 = vmul.f32 %v542, %v560
    %v575 = vmul.f32 %v543, %v564
    %v576 = vmul.f32 %v544, %v568
    %v581 = vcombine.low %v573, %v574
    %v582 = vcombine.low %v575, %v576
    %v584 = vunpack.c.l.s4 1966171168
    %v585 = vunpack.c.0.s8 %v584
    %v586 = vlaneseq
    %v587 = vshrl.u32 %v586, 7
    %v588 = vsub.s32 %v585, %v587
    %v589 = vrot.slane %v581, %v588
    %v591 = vunpack.c.l.s4 1966171168
    %v592 = vunpack.c.0.s8 %v591
    %v593 = vlaneseq
    %v594 = vshrl.u32 %v593, 7
    %v595 = vsub.s32 %v592, %v594
    %v596 = vrot.slane %v582, %v595
    %v597 = vcombine.low %v589, %v596
    %v599 = vunpack.c.l.s4 1966171168
    %v600 = vunpack.c.0.s8 %v599
    %v601 = vlaneseq
    %v602 = vshrl.u32 %v601, 7
    %v603 = vsub.s32 %v600, %v602
    %v604 = vrot.slane %v597, %v603
    %s606 = scalar_lea.vmem [#allocation2], 6
    %607 = vst.msk [vmem:[%s606] ss:$8 sm:$0xf] %vm144, %v604
    %608 = vst.msk [vmem:[%s606] ss:$8 sm:$0x0] %vm144, %v604
    %609 = vrot.lane.b32.xlu0 %v55, 16
    %v610 = vpop.permute.xlu0 %609
    %612 = vrot.lane.b32.xlu0 %v62, 16
    %v613 = vpop.permute.xlu0 %612
    %614 = vrot.lane.b32.xlu0 %v66, 16
    %v615 = vpop.permute.xlu0 %614
    %616 = vrot.lane.b32.xlu0 %v70, 16
    %v617 = vpop.permute.xlu0 %616
    %vm618 = vcmask 130048
    %v619 = vsel %vm618, %v613, %v615
    %v620 = vsel %vm618, %v615, %v617
    %v621 = vsel %vm618, %v617, %v610
    %v626 = vsel %vm618, %v610, %v613
    %s627 = scalar_lea.vmem [#allocation4], 7
    %v628 = vld [vmem:[%s627] ss:$8 sm:$0xf]
    %v630 = vlaneseq
    %v631 = vshrl.u32 %v630, 7
    %v632 = vsub.s32 0, %v631
    %v633 = vrot.slane %v628, %v632
    %v634 = vlaneseq
    %v635 = vshrl.u32 %v634, 7
    %v636 = vsub.s32 1, %v635
    %v637 = vrot.slane %v628, %v636
    %v638 = vlaneseq
    %v639 = vshrl.u32 %v638, 7
    %v640 = vsub.s32 2, %v639
    %v641 = vrot.slane %v628, %v640
    %v642 = vlaneseq
    %v643 = vshrl.u32 %v642, 7
    %v644 = vsub.s32 3, %v643
    %v645 = vrot.slane %v628, %v644
    %v650 = vmul.f32 %v626, %v633
    %v651 = vmul.f32 %v619, %v637
    %v652 = vmul.f32 %v620, %v641
    %v653 = vmul.f32 %v621, %v645
    %v658 = vcombine.low %v650, %v651
    %v659 = vcombine.low %v652, %v653
    %v661 = vunpack.c.l.s4 1966171168
    %v662 = vunpack.c.0.s8 %v661
    %v663 = vlaneseq
    %v664 = vshrl.u32 %v663, 7
    %v665 = vsub.s32 %v662, %v664
    %v666 = vrot.slane %v658, %v665
    %v668 = vunpack.c.l.s4 1966171168
    %v669 = vunpack.c.0.s8 %v668
    %v670 = vlaneseq
    %v671 = vshrl.u32 %v670, 7
    %v672 = vsub.s32 %v669, %v671
    %v673 = vrot.slane %v659, %v672
    %v674 = vcombine.low %v666, %v673
    %v676 = vunpack.c.l.s4 1966171168
    %v677 = vunpack.c.0.s8 %v676
    %v678 = vlaneseq
    %v679 = vshrl.u32 %v678, 7
    %v680 = vsub.s32 %v677, %v679
    %v681 = vrot.slane %v674, %v680
    %s683 = scalar_lea.vmem [#allocation2], 7
    %684 = vst.msk [vmem:[%s683] ss:$8 sm:$0xf] %vm144, %v681
    %685 = vst.msk [vmem:[%s683] ss:$8 sm:$0x0] %vm144, %v681
    %686 = vrot.lane.b32.xlu0 %v55, 15
    %v687 = vpop.permute.xlu0 %686
    %689 = vrot.lane.b32.xlu0 %v62, 15
    %v690 = vpop.permute.xlu0 %689
    %691 = vrot.lane.b32.xlu0 %v66, 15
    %v692 = vpop.permute.xlu0 %691
    %693 = vrot.lane.b32.xlu0 %v70, 15
    %v694 = vpop.permute.xlu0 %693
    %vm695 = vcmask 121856
    %v696 = vsel %vm695, %v690, %v692
    %v697 = vsel %vm695, %v692, %v694
    %v698 = vsel %vm695, %v694, %v687
    %v703 = vsel %vm695, %v687, %v690
    %s704 = scalar_lea.vmem [#allocation4], 32
    %v705 = vld [vmem:[%s704] ss:$8 sm:$0xf]
    %v707 = vlaneseq
    %v708 = vshrl.u32 %v707, 7
    %v709 = vsub.s32 0, %v708
    %v710 = vrot.slane %v705, %v709
    %v711 = vlaneseq
    %v712 = vshrl.u32 %v711, 7
    %v713 = vsub.s32 1, %v712
    %v714 = vrot.slane %v705, %v713
    %v715 = vlaneseq
    %v716 = vshrl.u32 %v715, 7
    %v717 = vsub.s32 2, %v716
    %v718 = vrot.slane %v705, %v717
    %v719 = vlaneseq
    %v720 = vshrl.u32 %v719, 7
    %v721 = vsub.s32 3, %v720
    %v722 = vrot.slane %v705, %v721
    %v727 = vmul.f32 %v703, %v710
    %v728 = vmul.f32 %v696, %v714
    %v729 = vmul.f32 %v697, %v718
    %v730 = vmul.f32 %v698, %v722
    %v735 = vcombine.low %v727, %v728
    %v736 = vcombine.low %v729, %v730
    %v738 = vunpack.c.l.s4 1966171168
    %v739 = vunpack.c.0.s8 %v738
    %v740 = vlaneseq
    %v741 = vshrl.u32 %v740, 7
    %v742 = vsub.s32 %v739, %v741
    %v743 = vrot.slane %v735, %v742
    %v745 = vunpack.c.l.s4 1966171168
    %v746 = vunpack.c.0.s8 %v745
    %v747 = vlaneseq
    %v748 = vshrl.u32 %v747, 7
    %v749 = vsub.s32 %v746, %v748
    %v750 = vrot.slane %v736, %v749
    %v751 = vcombine.low %v743, %v750
    %v753 = vunpack.c.l.s4 1966171168
    %v754 = vunpack.c.0.s8 %v753
    %v755 = vlaneseq
    %v756 = vshrl.u32 %v755, 7
    %v757 = vsub.s32 %v754, %v756
    %v758 = vrot.slane %v751, %v757
    %s760 = scalar_lea.vmem [#allocation2], 32
    %761 = vst.msk [vmem:[%s760] ss:$8 sm:$0xf] %vm144, %v758
    %762 = vst.msk [vmem:[%s760] ss:$8 sm:$0x0] %vm144, %v758
    %763 = vrot.lane.b32.xlu0 %v55, 14
    %v764 = vpop.permute.xlu0 %763
    %766 = vrot.lane.b32.xlu0 %v62, 14
    %v767 = vpop.permute.xlu0 %766
    %768 = vrot.lane.b32.xlu0 %v66, 14
    %v769 = vpop.permute.xlu0 %768
    %770 = vrot.lane.b32.xlu0 %v70, 14
    %v771 = vpop.permute.xlu0 %770
    %vm772 = vcmask 113664
    %v773 = vsel %vm772, %v767, %v769
    %v774 = vsel %vm772, %v769, %v771
    %v775 = vsel %vm772, %v771, %v764
    %v780 = vsel %vm772, %v764, %v767
    %s781 = scalar_lea.vmem [#allocation4], 33
    %v782 = vld [vmem:[%s781] ss:$8 sm:$0xf]
    %v784 = vlaneseq
    %v785 = vshrl.u32 %v784, 7
    %v786 = vsub.s32 0, %v785
    %v787 = vrot.slane %v782, %v786
    %v788 = vlaneseq
    %v789 = vshrl.u32 %v788, 7
    %v790 = vsub.s32 1, %v789
    %v791 = vrot.slane %v782, %v790
    %v792 = vlaneseq
    %v793 = vshrl.u32 %v792, 7
    %v794 = vsub.s32 2, %v793
    %v795 = vrot.slane %v782, %v794
    %v796 = vlaneseq
    %v797 = vshrl.u32 %v796, 7
    %v798 = vsub.s32 3, %v797
    %v799 = vrot.slane %v782, %v798
    %v804 = vmul.f32 %v780, %v787
    %v805 = vmul.f32 %v773, %v791
    %v806 = vmul.f32 %v774, %v795
    %v807 = vmul.f32 %v775, %v799
    %v812 = vcombine.low %v804, %v805
    %v813 = vcombine.low %v806, %v807
    %v815 = vunpack.c.l.s4 1966171168
    %v816 = vunpack.c.0.s8 %v815
    %v817 = vlaneseq
    %v818 = vshrl.u32 %v817, 7
    %v819 = vsub.s32 %v816, %v818
    %v820 = vrot.slane %v812, %v819
    %v822 = vunpack.c.l.s4 1966171168
    %v823 = vunpack.c.0.s8 %v822
    %v824 = vlaneseq
    %v825 = vshrl.u32 %v824, 7
    %v826 = vsub.s32 %v823, %v825
    %v827 = vrot.slane %v813, %v826
    %v828 = vcombine.low %v820, %v827
    %v830 = vunpack.c.l.s4 1966171168
    %v831 = vunpack.c.0.s8 %v830
    %v832 = vlaneseq
    %v833 = vshrl.u32 %v832, 7
    %v834 = vsub.s32 %v831, %v833
    %v835 = vrot.slane %v828, %v834
    %s837 = scalar_lea.vmem [#allocation2], 33
    %838 = vst.msk [vmem:[%s837] ss:$8 sm:$0xf] %vm144, %v835
    %839 = vst.msk [vmem:[%s837] ss:$8 sm:$0x0] %vm144, %v835
    %840 = vrot.lane.b32.xlu0 %v55, 2
    %v841 = vpop.permute.xlu0 %840
    %843 = vrot.lane.b32.xlu0 %v62, 2
    %v844 = vpop.permute.xlu0 %843
    %845 = vrot.lane.b32.xlu0 %v66, 2
    %v846 = vpop.permute.xlu0 %845
    %847 = vrot.lane.b32.xlu0 %v70, 2
    %v848 = vpop.permute.xlu0 %847
    %vm849 = vcmask 15360
    %v850 = vsel %vm849, %v844, %v846
    %v851 = vsel %vm849, %v846, %v848
    %v852 = vsel %vm849, %v848, %v841
    %v857 = vsel %vm849, %v841, %v844
    %s858 = scalar_lea.vmem [#allocation4], 34
    %v859 = vld [vmem:[%s858] ss:$8 sm:$0xf]
    %v861 = vlaneseq
    %v862 = vshrl.u32 %v861, 7
    %v863 = vsub.s32 0, %v862
    %v864 = vrot.slane %v859, %v863
    %v865 = vlaneseq
    %v866 = vshrl.u32 %v865, 7
    %v867 = vsub.s32 1, %v866
    %v868 = vrot.slane %v859, %v867
    %v869 = vlaneseq
    %v870 = vshrl.u32 %v869, 7
    %v871 = vsub.s32 2, %v870
    %v872 = vrot.slane %v859, %v871
    %v873 = vlaneseq
    %v874 = vshrl.u32 %v873, 7
    %v875 = vsub.s32 3, %v874
    %v876 = vrot.slane %v859, %v875
    %v881 = vmul.f32 %v857, %v864
    %v882 = vmul.f32 %v850, %v868
    %v883 = vmul.f32 %v851, %v872
    %v884 = vmul.f32 %v852, %v876
    %v889 = vcombine.low %v881, %v882
    %v890 = vcombine.low %v883, %v884
    %v892 = vunpack.c.l.s4 1966171168
    %v893 = vunpack.c.0.s8 %v892
    %v894 = vlaneseq
    %v895 = vshrl.u32 %v894, 7
    %v896 = vsub.s32 %v893, %v895
    %v897 = vrot.slane %v889, %v896
    %v899 = vunpack.c.l.s4 1966171168
    %v900 = vunpack.c.0.s8 %v899
    %v901 = vlaneseq
    %v902 = vshrl.u32 %v901, 7
    %v903 = vsub.s32 %v900, %v902
    %v904 = vrot.slane %v890, %v903
    %v905 = vcombine.low %v897, %v904
    %v907 = vunpack.c.l.s4 1966171168
    %v908 = vunpack.c.0.s8 %v907
    %v909 = vlaneseq
    %v910 = vshrl.u32 %v909, 7
    %v911 = vsub.s32 %v908, %v910
    %v912 = vrot.slane %v905, %v911
    %s914 = scalar_lea.vmem [#allocation2], 34
    %915 = vst.msk [vmem:[%s914] ss:$8 sm:$0xf] %vm144, %v912
    %916 = vst.msk [vmem:[%s914] ss:$8 sm:$0x0] %vm144, %v912
    %917 = vrot.lane.b32.xlu0 %v55, 1
    %v918 = vpop.permute.xlu0 %917
    %920 = vrot.lane.b32.xlu0 %v62, 1
    %v921 = vpop.permute.xlu0 %920
    %922 = vrot.lane.b32.xlu0 %v66, 1
    %v923 = vpop.permute.xlu0 %922
    %924 = vrot.lane.b32.xlu0 %v70, 1
    %v925 = vpop.permute.xlu0 %924
    %vm926 = vcmask 7168
    %v927 = vsel %vm926, %v921, %v923
    %v928 = vsel %vm926, %v923, %v925
    %v929 = vsel %vm926, %v925, %v918
    %v934 = vsel %vm926, %v918, %v921
    %s935 = scalar_lea.vmem [#allocation4], 35
    %v936 = vld [vmem:[%s935] ss:$8 sm:$0xf]
    %v938 = vlaneseq
    %v939 = vshrl.u32 %v938, 7
    %v940 = vsub.s32 0, %v939
    %v941 = vrot.slane %v936, %v940
    %v942 = vlaneseq
    %v943 = vshrl.u32 %v942, 7
    %v944 = vsub.s32 1, %v943
    %v945 = vrot.slane %v936, %v944
    %v946 = vlaneseq
    %v947 = vshrl.u32 %v946, 7
    %v948 = vsub.s32 2, %v947
    %v949 = vrot.slane %v936, %v948
    %v950 = vlaneseq
    %v951 = vshrl.u32 %v950, 7
    %v952 = vsub.s32 3, %v951
    %v953 = vrot.slane %v936, %v952
    %v958 = vmul.f32 %v934, %v941
    %v959 = vmul.f32 %v927, %v945
    %v960 = vmul.f32 %v928, %v949
    %v961 = vmul.f32 %v929, %v953
    %v966 = vcombine.low %v958, %v959
    %v967 = vcombine.low %v960, %v961
    %v969 = vunpack.c.l.s4 1966171168
    %v970 = vunpack.c.0.s8 %v969
    %v971 = vlaneseq
    %v972 = vshrl.u32 %v971, 7
    %v973 = vsub.s32 %v970, %v972
    %v974 = vrot.slane %v966, %v973
    %v976 = vunpack.c.l.s4 1966171168
    %v977 = vunpack.c.0.s8 %v976
    %v978 = vlaneseq
    %v979 = vshrl.u32 %v978, 7
    %v980 = vsub.s32 %v977, %v979
    %v981 = vrot.slane %v967, %v980
    %v982 = vcombine.low %v974, %v981
    %v984 = vunpack.c.l.s4 1966171168
    %v985 = vunpack.c.0.s8 %v984
    %v986 = vlaneseq
    %v987 = vshrl.u32 %v986, 7
    %v988 = vsub.s32 %v985, %v987
    %v989 = vrot.slane %v982, %v988
    %s991 = scalar_lea.vmem [#allocation2], 35
    %992 = vst.msk [vmem:[%s991] ss:$8 sm:$0xf] %vm144, %v989
    %993 = vst.msk [vmem:[%s991] ss:$8 sm:$0x0] %vm144, %v989
    %s994 = scalar_lea.vmem [#allocation4], 36
    %v995 = vld [vmem:[%s994] ss:$8 sm:$0xf]
    %v996 = vmul.f32 %v50, %v995
    %s997 = scalar_lea.vmem [#allocation2], 36
    %998 = vst.msk [vmem:[%s997] ss:$8 sm:$0xf] %vm144, %v996
    %999 = vst.msk [vmem:[%s997] ss:$8 sm:$0x0] %vm144, %v996
    %1000 = vrot.lane.b32.xlu0 %v62, 127
    %v1001 = vpop.permute.xlu0 %1000
    %1002 = vrot.lane.b32.xlu0 %v66, 127
    %v1003 = vpop.permute.xlu0 %1002
    %1004 = vrot.lane.b32.xlu0 %v70, 127
    %v1005 = vpop.permute.xlu0 %1004
    %1006 = vrot.lane.b32.xlu0 %v55, 127
    %v1007 = vpop.permute.xlu0 %1006
    %vm1008 = vcmask 1039360
    %v1009 = vsel %vm1008, %v1001, %v1003
    %v1010 = vsel %vm1008, %v1003, %v1005
    %v1011 = vsel %vm1008, %v1005, %v1007
    %v1017 = vsel %vm1008, %v1007, %v1001
    %s1018 = scalar_lea.vmem [#allocation4], 37
    %v1019 = vld [vmem:[%s1018] ss:$8 sm:$0xf]
    %v1021 = vlaneseq
    %v1022 = vshrl.u32 %v1021, 7
    %v1023 = vsub.s32 0, %v1022
    %v1024 = vrot.slane %v1019, %v1023
    %v1025 = vlaneseq
    %v1026 = vshrl.u32 %v1025, 7
    %v1027 = vsub.s32 1, %v1026
    %v1028 = vrot.slane %v1019, %v1027
    %v1029 = vlaneseq
    %v1030 = vshrl.u32 %v1029, 7
    %v1031 = vsub.s32 2, %v1030
    %v1032 = vrot.slane %v1019, %v1031
    %v1033 = vlaneseq
    %v1034 = vshrl.u32 %v1033, 7
    %v1035 = vsub.s32 3, %v1034
    %v1036 = vrot.slane %v1019, %v1035
    %v1041 = vmul.f32 %v1009, %v1024
    %v1042 = vmul.f32 %v1010, %v1028
    %v1043 = vmul.f32 %v1011, %v1032
    %v1044 = vmul.f32 %v1017, %v1036
    %v1049 = vcombine.low %v1041, %v1042
    %v1050 = vcombine.low %v1043, %v1044
    %v1052 = vunpack.c.l.s4 1966171168
    %v1053 = vunpack.c.0.s8 %v1052
    %v1054 = vlaneseq
    %v1055 = vshrl.u32 %v1054, 7
    %v1056 = vsub.s32 %v1053, %v1055
    %v1057 = vrot.slane %v1049, %v1056
    %v1059 = vunpack.c.l.s4 1966171168
    %v1060 = vunpack.c.0.s8 %v1059
    %v1061 = vlaneseq
    %v1062 = vshrl.u32 %v1061, 7
    %v1063 = vsub.s32 %v1060, %v1062
    %v1064 = vrot.slane %v1050, %v1063
    %v1065 = vcombine.low %v1057, %v1064
    %v1067 = vunpack.c.l.s4 1966171168
    %v1068 = vunpack.c.0.s8 %v1067
    %v1069 = vlaneseq
    %v1070 = vshrl.u32 %v1069, 7
    %v1071 = vsub.s32 %v1068, %v1070
    %v1072 = vrot.slane %v1065, %v1071
    %s1074 = scalar_lea.vmem [#allocation2], 37
    %1075 = vst.msk [vmem:[%s1074] ss:$8 sm:$0xf] %vm144, %v1072
    %1076 = vst.msk [vmem:[%s1074] ss:$8 sm:$0x0] %vm144, %v1072
    %1077 = vrot.lane.b32.xlu0 %v62, 126
    %v1078 = vpop.permute.xlu0 %1077
    %1079 = vrot.lane.b32.xlu0 %v66, 126
    %v1080 = vpop.permute.xlu0 %1079
    %1081 = vrot.lane.b32.xlu0 %v70, 126
    %v1082 = vpop.permute.xlu0 %1081
    %1083 = vrot.lane.b32.xlu0 %v55, 126
    %v1084 = vpop.permute.xlu0 %1083
    %vm1085 = vcmask 1031168
    %v1086 = vsel %vm1085, %v1078, %v1080
    %v1087 = vsel %vm1085, %v1080, %v1082
    %v1088 = vsel %vm1085, %v1082, %v1084
    %v1094 = vsel %vm1085, %v1084, %v1078
    %s1095 = scalar_lea.vmem [#allocation4], 38
    %v1096 = vld [vmem:[%s1095] ss:$8 sm:$0xf]
    %v1098 = vlaneseq
    %v1099 = vshrl.u32 %v1098, 7
    %v1100 = vsub.s32 0, %v1099
    %v1101 = vrot.slane %v1096, %v1100
    %v1102 = vlaneseq
    %v1103 = vshrl.u32 %v1102, 7
    %v1104 = vsub.s32 1, %v1103
    %v1105 = vrot.slane %v1096, %v1104
    %v1106 = vlaneseq
    %v1107 = vshrl.u32 %v1106, 7
    %v1108 = vsub.s32 2, %v1107
    %v1109 = vrot.slane %v1096, %v1108
    %v1110 = vlaneseq
    %v1111 = vshrl.u32 %v1110, 7
    %v1112 = vsub.s32 3, %v1111
    %v1113 = vrot.slane %v1096, %v1112
    %v1118 = vmul.f32 %v1086, %v1101
    %v1119 = vmul.f32 %v1087, %v1105
    %v1120 = vmul.f32 %v1088, %v1109
    %v1121 = vmul.f32 %v1094, %v1113
    %v1126 = vcombine.low %v1118, %v1119
    %v1127 = vcombine.low %v1120, %v1121
    %v1129 = vunpack.c.l.s4 1966171168
    %v1130 = vunpack.c.0.s8 %v1129
    %v1131 = vlaneseq
    %v1132 = vshrl.u32 %v1131, 7
    %v1133 = vsub.s32 %v1130, %v1132
    %v1134 = vrot.slane %v1126, %v1133
    %v1136 = vunpack.c.l.s4 1966171168
    %v1137 = vunpack.c.0.s8 %v1136
    %v1138 = vlaneseq
    %v1139 = vshrl.u32 %v1138, 7
    %v1140 = vsub.s32 %v1137, %v1139
    %v1141 = vrot.slane %v1127, %v1140
    %v1142 = vcombine.low %v1134, %v1141
    %v1144 = vunpack.c.l.s4 1966171168
    %v1145 = vunpack.c.0.s8 %v1144
    %v1146 = vlaneseq
    %v1147 = vshrl.u32 %v1146, 7
    %v1148 = vsub.s32 %v1145, %v1147
    %v1149 = vrot.slane %v1142, %v1148
    %s1151 = scalar_lea.vmem [#allocation2], 38
    %1152 = vst.msk [vmem:[%s1151] ss:$8 sm:$0xf] %vm144, %v1149
    %1153 = vst.msk [vmem:[%s1151] ss:$8 sm:$0x0] %vm144, %v1149
    %1154 = vrot.lane.b32.xlu0 %v62, 114
    %v1155 = vpop.permute.xlu0 %1154
    %1156 = vrot.lane.b32.xlu0 %v66, 114
    %v1157 = vpop.permute.xlu0 %1156
    %1158 = vrot.lane.b32.xlu0 %v70, 114
    %v1159 = vpop.permute.xlu0 %1158
    %1160 = vrot.lane.b32.xlu0 %v55, 114
    %v1161 = vpop.permute.xlu0 %1160
    %vm1162 = vcmask 932864
    %v1163 = vsel %vm1162, %v1155, %v1157
    %v1164 = vsel %vm1162, %v1157, %v1159
    %v1165 = vsel %vm1162, %v1159, %v1161
    %v1171 = vsel %vm1162, %v1161, %v1155
    %s1172 = scalar_lea.vmem [#allocation4], 39
    %v1173 = vld [vmem:[%s1172] ss:$8 sm:$0xf]
    %v1175 = vlaneseq
    %v1176 = vshrl.u32 %v1175, 7
    %v1177 = vsub.s32 0, %v1176
    %v1178 = vrot.slane %v1173, %v1177
    %v1179 = vlaneseq
    %v1180 = vshrl.u32 %v1179, 7
    %v1181 = vsub.s32 1, %v1180
    %v1182 = vrot.slane %v1173, %v1181
    %v1183 = vlaneseq
    %v1184 = vshrl.u32 %v1183, 7
    %v1185 = vsub.s32 2, %v1184
    %v1186 = vrot.slane %v1173, %v1185
    %v1187 = vlaneseq
    %v1188 = vshrl.u32 %v1187, 7
    %v1189 = vsub.s32 3, %v1188
    %v1190 = vrot.slane %v1173, %v1189
    %v1195 = vmul.f32 %v1163, %v1178
    %v1196 = vmul.f32 %v1164, %v1182
    %v1197 = vmul.f32 %v1165, %v1186
    %v1198 = vmul.f32 %v1171, %v1190
    %v1203 = vcombine.low %v1195, %v1196
    %v1204 = vcombine.low %v1197, %v1198
    %v1206 = vunpack.c.l.s4 1966171168
    %v1207 = vunpack.c.0.s8 %v1206
    %v1208 = vlaneseq
    %v1209 = vshrl.u32 %v1208, 7
    %v1210 = vsub.s32 %v1207, %v1209
    %v1211 = vrot.slane %v1203, %v1210
    %v1213 = vunpack.c.l.s4 1966171168
    %v1214 = vunpack.c.0.s8 %v1213
    %v1215 = vlaneseq
    %v1216 = vshrl.u32 %v1215, 7
    %v1217 = vsub.s32 %v1214, %v1216
    %v1218 = vrot.slane %v1204, %v1217
    %v1219 = vcombine.low %v1211, %v1218
    %v1221 = vunpack.c.l.s4 1966171168
    %v1222 = vunpack.c.0.s8 %v1221
    %v1223 = vlaneseq
    %v1224 = vshrl.u32 %v1223, 7
    %v1225 = vsub.s32 %v1222, %v1224
    %v1226 = vrot.slane %v1219, %v1225
    %s1228 = scalar_lea.vmem [#allocation2], 39
    %1229 = vst.msk [vmem:[%s1228] ss:$8 sm:$0xf] %vm144, %v1226
    %1230 = vst.msk [vmem:[%s1228] ss:$8 sm:$0x0] %vm144, %v1226
    %1231 = vrot.lane.b32.xlu0 %v62, 113
    %v1232 = vpop.permute.xlu0 %1231
    %1233 = vrot.lane.b32.xlu0 %v66, 113
    %v1234 = vpop.permute.xlu0 %1233
    %1235 = vrot.lane.b32.xlu0 %v70, 113
    %v1236 = vpop.permute.xlu0 %1235
    %1237 = vrot.lane.b32.xlu0 %v55, 113
    %v1238 = vpop.permute.xlu0 %1237
    %vm1239 = vcmask 924672
    %v1240 = vsel %vm1239, %v1232, %v1234
    %v1241 = vsel %vm1239, %v1234, %v1236
    %v1242 = vsel %vm1239, %v1236, %v1238
    %v1248 = vsel %vm1239, %v1238, %v1232
    %s1249 = scalar_lea.vmem [#allocation4], 64
    %v1250 = vld [vmem:[%s1249] ss:$8 sm:$0xf]
    %v1252 = vlaneseq
    %v1253 = vshrl.u32 %v1252, 7
    %v1254 = vsub.s32 0, %v1253
    %v1255 = vrot.slane %v1250, %v1254
    %v1256 = vlaneseq
    %v1257 = vshrl.u32 %v1256, 7
    %v1258 = vsub.s32 1, %v1257
    %v1259 = vrot.slane %v1250, %v1258
    %v1260 = vlaneseq
    %v1261 = vshrl.u32 %v1260, 7
    %v1262 = vsub.s32 2, %v1261
    %v1263 = vrot.slane %v1250, %v1262
    %v1264 = vlaneseq
    %v1265 = vshrl.u32 %v1264, 7
    %v1266 = vsub.s32 3, %v1265
    %v1267 = vrot.slane %v1250, %v1266
    %v1272 = vmul.f32 %v1240, %v1255
    %v1273 = vmul.f32 %v1241, %v1259
    %v1274 = vmul.f32 %v1242, %v1263
    %v1275 = vmul.f32 %v1248, %v1267
    %v1280 = vcombine.low %v1272, %v1273
    %v1281 = vcombine.low %v1274, %v1275
    %v1283 = vunpack.c.l.s4 1966171168
    %v1284 = vunpack.c.0.s8 %v1283
    %v1285 = vlaneseq
    %v1286 = vshrl.u32 %v1285, 7
    %v1287 = vsub.s32 %v1284, %v1286
    %v1288 = vrot.slane %v1280, %v1287
    %v1290 = vunpack.c.l.s4 1966171168
    %v1291 = vunpack.c.0.s8 %v1290
    %v1292 = vlaneseq
    %v1293 = vshrl.u32 %v1292, 7
    %v1294 = vsub.s32 %v1291, %v1293
    %v1295 = vrot.slane %v1281, %v1294
    %v1296 = vcombine.low %v1288, %v1295
    %v1298 = vunpack.c.l.s4 1966171168
    %v1299 = vunpack.c.0.s8 %v1298
    %v1300 = vlaneseq
    %v1301 = vshrl.u32 %v1300, 7
    %v1302 = vsub.s32 %v1299, %v1301
    %v1303 = vrot.slane %v1296, %v1302
    %s1305 = scalar_lea.vmem [#allocation2], 64
    %1306 = vst.msk [vmem:[%s1305] ss:$8 sm:$0xf] %vm144, %v1303
    %1307 = vst.msk [vmem:[%s1305] ss:$8 sm:$0x0] %vm144, %v1303
    %1308 = vrot.lane.b32.xlu0 %v62, 112
    %v1309 = vpop.permute.xlu0 %1308
    %1310 = vrot.lane.b32.xlu0 %v66, 112
    %v1311 = vpop.permute.xlu0 %1310
    %1312 = vrot.lane.b32.xlu0 %v70, 112
    %v1313 = vpop.permute.xlu0 %1312
    %1314 = vrot.lane.b32.xlu0 %v55, 112
    %v1315 = vpop.permute.xlu0 %1314
    %vm1316 = vcmask 916480
    %v1317 = vsel %vm1316, %v1309, %v1311
    %v1318 = vsel %vm1316, %v1311, %v1313
    %v1319 = vsel %vm1316, %v1313, %v1315
    %v1325 = vsel %vm1316, %v1315, %v1309
    %s1326 = scalar_lea.vmem [#allocation4], 65
    %v1327 = vld [vmem:[%s1326] ss:$8 sm:$0xf]
    %v1329 = vlaneseq
    %v1330 = vshrl.u32 %v1329, 7
    %v1331 = vsub.s32 0, %v1330
    %v1332 = vrot.slane %v1327, %v1331
    %v1333 = vlaneseq
    %v1334 = vshrl.u32 %v1333, 7
    %v1335 = vsub.s32 1, %v1334
    %v1336 = vrot.slane %v1327, %v1335
    %v1337 = vlaneseq
    %v1338 = vshrl.u32 %v1337, 7
    %v1339 = vsub.s32 2, %v1338
    %v1340 = vrot.slane %v1327, %v1339
    %v1341 = vlaneseq
    %v1342 = vshrl.u32 %v1341, 7
    %v1343 = vsub.s32 3, %v1342
    %v1344 = vrot.slane %v1327, %v1343
    %v1349 = vmul.f32 %v1317, %v1332
    %v1350 = vmul.f32 %v1318, %v1336
    %v1351 = vmul.f32 %v1319, %v1340
    %v1352 = vmul.f32 %v1325, %v1344
    %v1357 = vcombine.low %v1349, %v1350
    %v1358 = vcombine.low %v1351, %v1352
    %v1360 = vunpack.c.l.s4 1966171168
    %v1361 = vunpack.c.0.s8 %v1360
    %v1362 = vlaneseq
    %v1363 = vshrl.u32 %v1362, 7
    %v1364 = vsub.s32 %v1361, %v1363
    %v1365 = vrot.slane %v1357, %v1364
    %v1367 = vunpack.c.l.s4 1966171168
    %v1368 = vunpack.c.0.s8 %v1367
    %v1369 = vlaneseq
    %v1370 = vshrl.u32 %v1369, 7
    %v1371 = vsub.s32 %v1368, %v1370
    %v1372 = vrot.slane %v1358, %v1371
    %v1373 = vcombine.low %v1365, %v1372
    %v1375 = vunpack.c.l.s4 1966171168
    %v1376 = vunpack.c.0.s8 %v1375
    %v1377 = vlaneseq
    %v1378 = vshrl.u32 %v1377, 7
    %v1379 = vsub.s32 %v1376, %v1378
    %v1380 = vrot.slane %v1373, %v1379
    %s1382 = scalar_lea.vmem [#allocation2], 65
    %1383 = vst.msk [vmem:[%s1382] ss:$8 sm:$0xf] %vm144, %v1380
    %1384 = vst.msk [vmem:[%s1382] ss:$8 sm:$0x0] %vm144, %v1380
    %1385 = vrot.lane.b32.xlu0 %v62, 111
    %v1386 = vpop.permute.xlu0 %1385
    %1387 = vrot.lane.b32.xlu0 %v66, 111
    %v1388 = vpop.permute.xlu0 %1387
    %1389 = vrot.lane.b32.xlu0 %v70, 111
    %v1390 = vpop.permute.xlu0 %1389
    %1391 = vrot.lane.b32.xlu0 %v55, 111
    %v1392 = vpop.permute.xlu0 %1391
    %vm1393 = vcmask 908288
    %v1394 = vsel %vm1393, %v1386, %v1388
    %v1395 = vsel %vm1393, %v1388, %v1390
    %v1396 = vsel %vm1393, %v1390, %v1392
    %v1402 = vsel %vm1393, %v1392, %v1386
    %s1403 = scalar_lea.vmem [#allocation4], 66
    %v1404 = vld [vmem:[%s1403] ss:$8 sm:$0xf]
    %v1406 = vlaneseq
    %v1407 = vshrl.u32 %v1406, 7
    %v1408 = vsub.s32 0, %v1407
    %v1409 = vrot.slane %v1404, %v1408
    %v1410 = vlaneseq
    %v1411 = vshrl.u32 %v1410, 7
    %v1412 = vsub.s32 1, %v1411
    %v1413 = vrot.slane %v1404, %v1412
    %v1414 = vlaneseq
    %v1415 = vshrl.u32 %v1414, 7
    %v1416 = vsub.s32 2, %v1415
    %v1417 = vrot.slane %v1404, %v1416
    %v1418 = vlaneseq
    %v1419 = vshrl.u32 %v1418, 7
    %v1420 = vsub.s32 3, %v1419
    %v1421 = vrot.slane %v1404, %v1420
    %v1426 = vmul.f32 %v1394, %v1409
    %v1427 = vmul.f32 %v1395, %v1413
    %v1428 = vmul.f32 %v1396, %v1417
    %v1429 = vmul.f32 %v1402, %v1421
    %v1434 = vcombine.low %v1426, %v1427
    %v1435 = vcombine.low %v1428, %v1429
    %v1437 = vunpack.c.l.s4 1966171168
    %v1438 = vunpack.c.0.s8 %v1437
    %v1439 = vlaneseq
    %v1440 = vshrl.u32 %v1439, 7
    %v1441 = vsub.s32 %v1438, %v1440
    %v1442 = vrot.slane %v1434, %v1441
    %v1444 = vunpack.c.l.s4 1966171168
    %v1445 = vunpack.c.0.s8 %v1444
    %v1446 = vlaneseq
    %v1447 = vshrl.u32 %v1446, 7
    %v1448 = vsub.s32 %v1445, %v1447
    %v1449 = vrot.slane %v1435, %v1448
    %v1450 = vcombine.low %v1442, %v1449
    %v1452 = vunpack.c.l.s4 1966171168
    %v1453 = vunpack.c.0.s8 %v1452
    %v1454 = vlaneseq
    %v1455 = vshrl.u32 %v1454, 7
    %v1456 = vsub.s32 %v1453, %v1455
    %v1457 = vrot.slane %v1450, %v1456
    %s1459 = scalar_lea.vmem [#allocation2], 66
    %1460 = vst.msk [vmem:[%s1459] ss:$8 sm:$0xf] %vm144, %v1457
    %1461 = vst.msk [vmem:[%s1459] ss:$8 sm:$0x0] %vm144, %v1457
    %1462 = vrot.lane.b32.xlu0 %v62, 110
    %v1463 = vpop.permute.xlu0 %1462
    %1464 = vrot.lane.b32.xlu0 %v66, 110
    %v1465 = vpop.permute.xlu0 %1464
    %1466 = vrot.lane.b32.xlu0 %v70, 110
    %v1467 = vpop.permute.xlu0 %1466
    %1468 = vrot.lane.b32.xlu0 %v55, 110
    %v1469 = vpop.permute.xlu0 %1468
    %vm1470 = vcmask 900096
    %v1471 = vsel %vm1470, %v1463, %v1465
    %v1472 = vsel %vm1470, %v1465, %v1467
    %v1473 = vsel %vm1470, %v1467, %v1469
    %v1479 = vsel %vm1470, %v1469, %v1463
    %s1480 = scalar_lea.vmem [#allocation4], 67
    %v1481 = vld [vmem:[%s1480] ss:$8 sm:$0xf]
    %v1483 = vlaneseq
    %v1484 = vshrl.u32 %v1483, 7
    %v1485 = vsub.s32 0, %v1484
    %v1486 = vrot.slane %v1481, %v1485
    %v1487 = vlaneseq
    %v1488 = vshrl.u32 %v1487, 7
    %v1489 = vsub.s32 1, %v1488
    %v1490 = vrot.slane %v1481, %v1489
    %v1491 = vlaneseq
    %v1492 = vshrl.u32 %v1491, 7
    %v1493 = vsub.s32 2, %v1492
    %v1494 = vrot.slane %v1481, %v1493
    %v1495 = vlaneseq
    %v1496 = vshrl.u32 %v1495, 7
    %v1497 = vsub.s32 3, %v1496
    %v1498 = vrot.slane %v1481, %v1497
    %v1503 = vmul.f32 %v1471, %v1486
    %v1504 = vmul.f32 %v1472, %v1490
    %v1505 = vmul.f32 %v1473, %v1494
    %v1506 = vmul.f32 %v1479, %v1498
    %v1511 = vcombine.low %v1503, %v1504
    %v1512 = vcombine.low %v1505, %v1506
    %v1514 = vunpack.c.l.s4 1966171168
    %v1515 = vunpack.c.0.s8 %v1514
    %v1516 = vlaneseq
    %v1517 = vshrl.u32 %v1516, 7
    %v1518 = vsub.s32 %v1515, %v1517
    %v1519 = vrot.slane %v1511, %v1518
    %v1521 = vunpack.c.l.s4 1966171168
    %v1522 = vunpack.c.0.s8 %v1521
    %v1523 = vlaneseq
    %v1524 = vshrl.u32 %v1523, 7
    %v1525 = vsub.s32 %v1522, %v1524
    %v1526 = vrot.slane %v1512, %v1525
    %v1527 = vcombine.low %v1519, %v1526
    %v1529 = vunpack.c.l.s4 1966171168
    %v1530 = vunpack.c.0.s8 %v1529
    %v1531 = vlaneseq
    %v1532 = vshrl.u32 %v1531, 7
    %v1533 = vsub.s32 %v1530, %v1532
    %v1534 = vrot.slane %v1527, %v1533
    %s1536 = scalar_lea.vmem [#allocation2], 67
    %1537 = vst.msk [vmem:[%s1536] ss:$8 sm:$0xf] %vm144, %v1534
    %1538 = vst.msk [vmem:[%s1536] ss:$8 sm:$0x0] %vm144, %v1534
    %1539 = vrot.lane.b32.xlu0 %v62, 98
    %v1540 = vpop.permute.xlu0 %1539
    %1541 = vrot.lane.b32.xlu0 %v66, 98
    %v1542 = vpop.permute.xlu0 %1541
    %1543 = vrot.lane.b32.xlu0 %v70, 98
    %v1544 = vpop.permute.xlu0 %1543
    %1545 = vrot.lane.b32.xlu0 %v55, 98
    %v1546 = vpop.permute.xlu0 %1545
    %vm1547 = vcmask 801792
    %v1548 = vsel %vm1547, %v1540, %v1542
    %v1549 = vsel %vm1547, %v1542, %v1544
    %v1550 = vsel %vm1547, %v1544, %v1546
    %v1556 = vsel %vm1547, %v1546, %v1540
    %s1557 = scalar_lea.vmem [#allocation4], 68
    %v1558 = vld [vmem:[%s1557] ss:$8 sm:$0xf]
    %v1560 = vlaneseq
    %v1561 = vshrl.u32 %v1560, 7
    %v1562 = vsub.s32 0, %v1561
    %v1563 = vrot.slane %v1558, %v1562
    %v1564 = vlaneseq
    %v1565 = vshrl.u32 %v1564, 7
    %v1566 = vsub.s32 1, %v1565
    %v1567 = vrot.slane %v1558, %v1566
    %v1568 = vlaneseq
    %v1569 = vshrl.u32 %v1568, 7
    %v1570 = vsub.s32 2, %v1569
    %v1571 = vrot.slane %v1558, %v1570
    %v1572 = vlaneseq
    %v1573 = vshrl.u32 %v1572, 7
    %v1574 = vsub.s32 3, %v1573
    %v1575 = vrot.slane %v1558, %v1574
    %v1580 = vmul.f32 %v1548, %v1563
    %v1581 = vmul.f32 %v1549, %v1567
    %v1582 = vmul.f32 %v1550, %v1571
    %v1583 = vmul.f32 %v1556, %v1575
    %v1588 = vcombine.low %v1580, %v1581
    %v1589 = vcombine.low %v1582, %v1583
    %v1591 = vunpack.c.l.s4 1966171168
    %v1592 = vunpack.c.0.s8 %v1591
    %v1593 = vlaneseq
    %v1594 = vshrl.u32 %v1593, 7
    %v1595 = vsub.s32 %v1592, %v1594
    %v1596 = vrot.slane %v1588, %v1595
    %v1598 = vunpack.c.l.s4 1966171168
    %v1599 = vunpack.c.0.s8 %v1598
    %v1600 = vlaneseq
    %v1601 = vshrl.u32 %v1600, 7
    %v1602 = vsub.s32 %v1599, %v1601
    %v1603 = vrot.slane %v1589, %v1602
    %v1604 = vcombine.low %v1596, %v1603
    %v1606 = vunpack.c.l.s4 1966171168
    %v1607 = vunpack.c.0.s8 %v1606
    %v1608 = vlaneseq
    %v1609 = vshrl.u32 %v1608, 7
    %v1610 = vsub.s32 %v1607, %v1609
    %v1611 = vrot.slane %v1604, %v1610
    %s1613 = scalar_lea.vmem [#allocation2], 68
    %1614 = vst.msk [vmem:[%s1613] ss:$8 sm:$0xf] %vm144, %v1611
    %1615 = vst.msk [vmem:[%s1613] ss:$8 sm:$0x0] %vm144, %v1611
    %1616 = vrot.lane.b32.xlu0 %v62, 97
    %v1617 = vpop.permute.xlu0 %1616
    %1618 = vrot.lane.b32.xlu0 %v66, 97
    %v1619 = vpop.permute.xlu0 %1618
    %1620 = vrot.lane.b32.xlu0 %v70, 97
    %v1621 = vpop.permute.xlu0 %1620
    %1622 = vrot.lane.b32.xlu0 %v55, 97
    %v1623 = vpop.permute.xlu0 %1622
    %vm1624 = vcmask 793600
    %v1625 = vsel %vm1624, %v1617, %v1619
    %v1626 = vsel %vm1624, %v1619, %v1621
    %v1627 = vsel %vm1624, %v1621, %v1623
    %v1633 = vsel %vm1624, %v1623, %v1617
    %s1634 = scalar_lea.vmem [#allocation4], 69
    %v1635 = vld [vmem:[%s1634] ss:$8 sm:$0xf]
    %v1637 = vlaneseq
    %v1638 = vshrl.u32 %v1637, 7
    %v1639 = vsub.s32 0, %v1638
    %v1640 = vrot.slane %v1635, %v1639
    %v1641 = vlaneseq
    %v1642 = vshrl.u32 %v1641, 7
    %v1643 = vsub.s32 1, %v1642
    %v1644 = vrot.slane %v1635, %v1643
    %v1645 = vlaneseq
    %v1646 = vshrl.u32 %v1645, 7
    %v1647 = vsub.s32 2, %v1646
    %v1648 = vrot.slane %v1635, %v1647
    %v1649 = vlaneseq
    %v1650 = vshrl.u32 %v1649, 7
    %v1651 = vsub.s32 3, %v1650
    %v1652 = vrot.slane %v1635, %v1651
    %v1657 = vmul.f32 %v1625, %v1640
    %v1658 = vmul.f32 %v1626, %v1644
    %v1659 = vmul.f32 %v1627, %v1648
    %v1660 = vmul.f32 %v1633, %v1652
    %v1665 = vcombine.low %v1657, %v1658
    %v1666 = vcombine.low %v1659, %v1660
    %v1668 = vunpack.c.l.s4 1966171168
    %v1669 = vunpack.c.0.s8 %v1668
    %v1670 = vlaneseq
    %v1671 = vshrl.u32 %v1670, 7
    %v1672 = vsub.s32 %v1669, %v1671
    %v1673 = vrot.slane %v1665, %v1672
    %v1675 = vunpack.c.l.s4 1966171168
    %v1676 = vunpack.c.0.s8 %v1675
    %v1677 = vlaneseq
    %v1678 = vshrl.u32 %v1677, 7
    %v1679 = vsub.s32 %v1676, %v1678
    %v1680 = vrot.slane %v1666, %v1679
    %v1681 = vcombine.low %v1673, %v1680
    %v1683 = vunpack.c.l.s4 1966171168
    %v1684 = vunpack.c.0.s8 %v1683
    %v1685 = vlaneseq
    %v1686 = vshrl.u32 %v1685, 7
    %v1687 = vsub.s32 %v1684, %v1686
    %v1688 = vrot.slane %v1681, %v1687
    %s1690 = scalar_lea.vmem [#allocation2], 69
    %1691 = vst.msk [vmem:[%s1690] ss:$8 sm:$0xf] %vm144, %v1688
    %1692 = vst.msk [vmem:[%s1690] ss:$8 sm:$0x0] %vm144, %v1688
    %1693 = vrot.lane.b32.xlu0 %v62, 96
    %v1694 = vpop.permute.xlu0 %1693
    %1695 = vrot.lane.b32.xlu0 %v66, 96
    %v1696 = vpop.permute.xlu0 %1695
    %1697 = vrot.lane.b32.xlu0 %v70, 96
    %v1698 = vpop.permute.xlu0 %1697
    %1699 = vrot.lane.b32.xlu0 %v55, 96
    %v1700 = vpop.permute.xlu0 %1699
    %vm1701 = vcmask 785408
    %v1702 = vsel %vm1701, %v1694, %v1696
    %v1703 = vsel %vm1701, %v1696, %v1698
    %v1704 = vsel %vm1701, %v1698, %v1700
    %v1710 = vsel %vm1701, %v1700, %v1694
    %s1711 = scalar_lea.vmem [#allocation4], 70
    %v1712 = vld [vmem:[%s1711] ss:$8 sm:$0xf]
    %v1714 = vlaneseq
    %v1715 = vshrl.u32 %v1714, 7
    %v1716 = vsub.s32 0, %v1715
    %v1717 = vrot.slane %v1712, %v1716
    %v1718 = vlaneseq
    %v1719 = vshrl.u32 %v1718, 7
    %v1720 = vsub.s32 1, %v1719
    %v1721 = vrot.slane %v1712, %v1720
    %v1722 = vlaneseq
    %v1723 = vshrl.u32 %v1722, 7
    %v1724 = vsub.s32 2, %v1723
    %v1725 = vrot.slane %v1712, %v1724
    %v1726 = vlaneseq
    %v1727 = vshrl.u32 %v1726, 7
    %v1728 = vsub.s32 3, %v1727
    %v1729 = vrot.slane %v1712, %v1728
    %v1734 = vmul.f32 %v1702, %v1717
    %v1735 = vmul.f32 %v1703, %v1721
    %v1736 = vmul.f32 %v1704, %v1725
    %v1737 = vmul.f32 %v1710, %v1729
    %v1742 = vcombine.low %v1734, %v1735
    %v1743 = vcombine.low %v1736, %v1737
    %v1745 = vunpack.c.l.s4 1966171168
    %v1746 = vunpack.c.0.s8 %v1745
    %v1747 = vlaneseq
    %v1748 = vshrl.u32 %v1747, 7
    %v1749 = vsub.s32 %v1746, %v1748
    %v1750 = vrot.slane %v1742, %v1749
    %v1752 = vunpack.c.l.s4 1966171168
    %v1753 = vunpack.c.0.s8 %v1752
    %v1754 = vlaneseq
    %v1755 = vshrl.u32 %v1754, 7
    %v1756 = vsub.s32 %v1753, %v1755
    %v1757 = vrot.slane %v1743, %v1756
    %v1758 = vcombine.low %v1750, %v1757
    %v1760 = vunpack.c.l.s4 1966171168
    %v1761 = vunpack.c.0.s8 %v1760
    %v1762 = vlaneseq
    %v1763 = vshrl.u32 %v1762, 7
    %v1764 = vsub.s32 %v1761, %v1763
    %v1765 = vrot.slane %v1758, %v1764
    %s1767 = scalar_lea.vmem [#allocation2], 70
    %1768 = vst.msk [vmem:[%s1767] ss:$8 sm:$0xf] %vm144, %v1765
    %1769 = vst.msk [vmem:[%s1767] ss:$8 sm:$0x0] %vm144, %v1765
    %1770 = vrot.lane.b32.xlu0 %v62, 95
    %v1771 = vpop.permute.xlu0 %1770
    %1772 = vrot.lane.b32.xlu0 %v66, 95
    %v1773 = vpop.permute.xlu0 %1772
    %1774 = vrot.lane.b32.xlu0 %v70, 95
    %v1775 = vpop.permute.xlu0 %1774
    %1776 = vrot.lane.b32.xlu0 %v55, 95
    %v1777 = vpop.permute.xlu0 %1776
    %vm1778 = vcmask 777216
    %v1779 = vsel %vm1778, %v1771, %v1773
    %v1780 = vsel %vm1778, %v1773, %v1775
    %v1781 = vsel %vm1778, %v1775, %v1777
    %v1787 = vsel %vm1778, %v1777, %v1771
    %s1788 = scalar_lea.vmem [#allocation4], 71
    %v1789 = vld [vmem:[%s1788] ss:$8 sm:$0xf]
    %v1791 = vlaneseq
    %v1792 = vshrl.u32 %v1791, 7
    %v1793 = vsub.s32 0, %v1792
    %v1794 = vrot.slane %v1789, %v1793
    %v1795 = vlaneseq
    %v1796 = vshrl.u32 %v1795, 7
    %v1797 = vsub.s32 1, %v1796
    %v1798 = vrot.slane %v1789, %v1797
    %v1799 = vlaneseq
    %v1800 = vshrl.u32 %v1799, 7
    %v1801 = vsub.s32 2, %v1800
    %v1802 = vrot.slane %v1789, %v1801
    %v1803 = vlaneseq
    %v1804 = vshrl.u32 %v1803, 7
    %v1805 = vsub.s32 3, %v1804
    %v1806 = vrot.slane %v1789, %v1805
    %v1811 = vmul.f32 %v1779, %v1794
    %v1812 = vmul.f32 %v1780, %v1798
    %v1813 = vmul.f32 %v1781, %v1802
    %v1814 = vmul.f32 %v1787, %v1806
    %v1819 = vcombine.low %v1811, %v1812
    %v1820 = vcombine.low %v1813, %v1814
    %v1822 = vunpack.c.l.s4 1966171168
    %v1823 = vunpack.c.0.s8 %v1822
    %v1824 = vlaneseq
    %v1825 = vshrl.u32 %v1824, 7
    %v1826 = vsub.s32 %v1823, %v1825
    %v1827 = vrot.slane %v1819, %v1826
    %v1829 = vunpack.c.l.s4 1966171168
    %v1830 = vunpack.c.0.s8 %v1829
    %v1831 = vlaneseq
    %v1832 = vshrl.u32 %v1831, 7
    %v1833 = vsub.s32 %v1830, %v1832
    %v1834 = vrot.slane %v1820, %v1833
    %v1835 = vcombine.low %v1827, %v1834
    %v1837 = vunpack.c.l.s4 1966171168
    %v1838 = vunpack.c.0.s8 %v1837
    %v1839 = vlaneseq
    %v1840 = vshrl.u32 %v1839, 7
    %v1841 = vsub.s32 %v1838, %v1840
    %v1842 = vrot.slane %v1835, %v1841
    %s1844 = scalar_lea.vmem [#allocation2], 71
    %1845 = vst.msk [vmem:[%s1844] ss:$8 sm:$0xf] %vm144, %v1842
    %1846 = vst.msk [vmem:[%s1844] ss:$8 sm:$0x0] %vm144, %v1842
    %1847 = vrot.lane.b32.xlu0 %v62, 94
    %v1848 = vpop.permute.xlu0 %1847
    %1849 = vrot.lane.b32.xlu0 %v66, 94
    %v1850 = vpop.permute.xlu0 %1849
    %1851 = vrot.lane.b32.xlu0 %v70, 94
    %v1852 = vpop.permute.xlu0 %1851
    %1853 = vrot.lane.b32.xlu0 %v55, 94
    %v1854 = vpop.permute.xlu0 %1853
    %vm1855 = vcmask 769024
    %v1856 = vsel %vm1855, %v1848, %v1850
    %v1857 = vsel %vm1855, %v1850, %v1852
    %v1858 = vsel %vm1855, %v1852, %v1854
    %v1864 = vsel %vm1855, %v1854, %v1848
    %s1865 = scalar_lea.vmem [#allocation4], 96
    %v1866 = vld [vmem:[%s1865] ss:$8 sm:$0xf]
    %v1868 = vlaneseq
    %v1869 = vshrl.u32 %v1868, 7
    %v1870 = vsub.s32 0, %v1869
    %v1871 = vrot.slane %v1866, %v1870
    %v1872 = vlaneseq
    %v1873 = vshrl.u32 %v1872, 7
    %v1874 = vsub.s32 1, %v1873
    %v1875 = vrot.slane %v1866, %v1874
    %v1876 = vlaneseq
    %v1877 = vshrl.u32 %v1876, 7
    %v1878 = vsub.s32 2, %v1877
    %v1879 = vrot.slane %v1866, %v1878
    %v1880 = vlaneseq
    %v1881 = vshrl.u32 %v1880, 7
    %v1882 = vsub.s32 3, %v1881
    %v1883 = vrot.slane %v1866, %v1882
    %v1888 = vmul.f32 %v1856, %v1871
    %v1889 = vmul.f32 %v1857, %v1875
    %v1890 = vmul.f32 %v1858, %v1879
    %v1891 = vmul.f32 %v1864, %v1883
    %v1896 = vcombine.low %v1888, %v1889
    %v1897 = vcombine.low %v1890, %v1891
    %v1899 = vunpack.c.l.s4 1966171168
    %v1900 = vunpack.c.0.s8 %v1899
    %v1901 = vlaneseq
    %v1902 = vshrl.u32 %v1901, 7
    %v1903 = vsub.s32 %v1900, %v1902
    %v1904 = vrot.slane %v1896, %v1903
    %v1906 = vunpack.c.l.s4 1966171168
    %v1907 = vunpack.c.0.s8 %v1906
    %v1908 = vlaneseq
    %v1909 = vshrl.u32 %v1908, 7
    %v1910 = vsub.s32 %v1907, %v1909
    %v1911 = vrot.slane %v1897, %v1910
    %v1912 = vcombine.low %v1904, %v1911
    %v1914 = vunpack.c.l.s4 1966171168
    %v1915 = vunpack.c.0.s8 %v1914
    %v1916 = vlaneseq
    %v1917 = vshrl.u32 %v1916, 7
    %v1918 = vsub.s32 %v1915, %v1917
    %v1919 = vrot.slane %v1912, %v1918
    %s1921 = scalar_lea.vmem [#allocation2], 96
    %1922 = vst.msk [vmem:[%s1921] ss:$8 sm:$0xf] %vm144, %v1919
    %1923 = vst.msk [vmem:[%s1921] ss:$8 sm:$0x0] %vm144, %v1919
    %v1924 = vld [vmem:[%s2] sm:$0xf]
    %v1925 = vld [vmem:[#allocation2] sm:$0xff]
    %v1926 = vld [vmem:[#allocation2 + $0x8] sm:$0xff]
    %v1927 = vld [vmem:[#allocation2 + $0x10] sm:$0xff]
    %v1928 = vld [vmem:[#allocation2 + $0x18] sm:$0xff]
    %v1929 = vld [vmem:[#allocation2 + $0x20] sm:$0xff]
    %v1930 = vld [vmem:[#allocation2 + $0x28] sm:$0xff]
    %v1931 = vld [vmem:[#allocation2 + $0x30] sm:$0xff]
    %v1932 = vld [vmem:[#allocation2 + $0x38] sm:$0xff]
    %v1933 = vld [vmem:[#allocation2 + $0x40] sm:$0xff]
    %v1934 = vld [vmem:[#allocation2 + $0x48] sm:$0xff]
    %v1935 = vld [vmem:[#allocation2 + $0x50] sm:$0xff]
    %v1936 = vld [vmem:[#allocation2 + $0x58] sm:$0xff]
    %v1937 = vld [vmem:[#allocation2 + $0x60] sm:$0x1]
    %v1938 = vld [vmem:[#allocation2 + $0x68] sm:$0x1]
    %v1939 = vld [vmem:[#allocation2 + $0x70] sm:$0x1]
    %v1940 = vld [vmem:[#allocation2 + $0x78] sm:$0x1]
    %v1941 = vld [vmem:[%s3] sm:$0xf]
    %1943 = vset.pattern.permute.xlu0 0
    %1944 = vperm.xlu0 %1943, %v1941
    %v1945 = vpop.permute.xlu0 %1944
    %vm1947 = vcmask 203776
    %v1949 = vsel %vm1947, %v1924, 0
    %vm1951 = vcmask 1040384
    %v1953 = vsel %vm1951, %v1937, 0
    %v1956 = vsel %vm1951, %v1938, 0
    %v1959 = vsel %vm1951, %v1939, 0
    %v1962 = vsel %vm1951, %v1940, 0
    %1964 = vmatprep.subr.mxu0 %v1926
    %1965 = vmatpush1.msra.mxu0 %v1925
    %1966 = vmatprep.subr.mxu0 %v1930
    %1967 = vmatpush1.msra.mxu0 %v1929
    %1968 = vmatprep.subr.mxu0 %v1934
    %1969 = vmatpush1.msra.mxu0 %v1933
    %1970 = vmatprep.subr.mxu0 %v1956
    %1971 = vmatpush1.msra.mxu0 %v1953
    %1972 = vmatprep.subr.mxu0 0.0
    %1973 = vmatpush1.msra.mxu0 0.0
    %1974 = vmatprep.subr.mxu0 0.0
    %1975 = vmatpush1.msra.mxu0 0.0
    %1976 = vmatprep.subr.mxu0 0.0
    %1977 = vmatpush1.msra.mxu0 0.0
    %1978 = vmatprep.subr.mxu0 0.0
    %1979 = vmatpush1.msra.mxu0 0.0
    %1980 = vmatprep.subr.mxu0 0.0
    %1981 = vmatpush1.msra.mxu0 0.0
    %1982 = vmatprep.subr.mxu0 0.0
    %1983 = vmatpush1.msra.mxu0 0.0
    %1984 = vmatprep.subr.mxu0 0.0
    %1985 = vmatpush1.msra.mxu0 0.0
    %1986 = vmatprep.subr.mxu0 0.0
    %1987 = vmatpush1.msra.mxu0 0.0
    %1988 = vmatprep.subr.mxu0 0.0
    %1989 = vmatpush1.msra.mxu0 0.0
    %1990 = vmatprep.subr.mxu0 0.0
    %1991 = vmatpush1.msra.mxu0 0.0
    %1992 = vmatprep.subr.mxu0 0.0
    %1993 = vmatpush1.msra.mxu0 0.0
    %1994 = vmatprep.subr.mxu0 0.0
    %1995 = vmatpush1.msra.mxu0 0.0
    %1996 = vmatprep.subr.mxu0 0.0
    %1997 = vmatpush1.msra.mxu0 0.0
    %1998 = vmatprep.subr.mxu0 0.0
    %1999 = vmatpush1.msra.mxu0 0.0
    %2000 = vmatprep.subr.mxu0 0.0
    %2001 = vmatpush1.msra.mxu0 0.0
    %2002 = vmatprep.subr.mxu0 0.0
    %2003 = vmatpush1.msra.mxu0 0.0
    %2004 = vmatprep.subr.mxu0 0.0
    %2005 = vmatpush1.msra.mxu0 0.0
    %2006 = vmatprep.subr.mxu0 0.0
    %2007 = vmatpush1.msra.mxu0 0.0
    %2008 = vmatprep.subr.mxu0 0.0
    %2009 = vmatpush1.msra.mxu0 0.0
    %2010 = vmatprep.subr.mxu0 0.0
    %2011 = vmatpush1.msra.mxu0 0.0
    %2012 = vmatprep.subr.mxu0 0.0
    %2013 = vmatpush1.msra.mxu0 0.0
    %2014 = vmatprep.subr.mxu0 0.0
    %2015 = vmatpush1.msra.mxu0 0.0
    %2016 = vmatprep.subr.mxu0 0.0
    %2017 = vmatpush1.msra.mxu0 0.0
    %2018 = vmatprep.subr.mxu0 0.0
    %2019 = vmatpush1.msra.mxu0 0.0
    %2020 = vmatprep.subr.mxu0 0.0
    %2021 = vmatpush1.msra.mxu0 0.0
    %2022 = vmatprep.subr.mxu0 0.0
    %2023 = vmatpush1.msra.mxu0 0.0
    %2024 = vmatprep.subr.mxu0 0.0
    %2025 = vmatpush1.msra.mxu0 0.0
    %2026 = vmatprep.subr.mxu0 0.0
    %2027 = vmatpush1.msra.mxu0 0.0
    %2028 = vmatprep.mubr.f32.mxu0 0.0
    %2029 = vmatmul.mubr.f32.gmra.mrb[0].mxu0 %v1949
    %v2030 = vpop.f32.mrb[0].mxu0
    %v2031 = vadd.f32 %v1945, %v2030
    %v2032 = vpop.f32.mrb[0].mxu0
    %v2033 = vadd.f32 %v1945, %v2032
    %2034 = vdwg.mxu0
    %2035 = vmatprep.subr.mxu0 %v1928
    %2036 = vmatpush1.msra.mxu0 %v1927
    %2037 = vmatprep.subr.mxu0 %v1932
    %2038 = vmatpush1.msra.mxu0 %v1931
    %2039 = vmatprep.subr.mxu0 %v1936
    %2040 = vmatpush1.msra.mxu0 %v1935
    %2041 = vmatprep.subr.mxu0 %v1962
    %2042 = vmatpush1.msra.mxu0 %v1959
    %2043 = vmatprep.subr.mxu0 0.0
    %2044 = vmatpush1.msra.mxu0 0.0
    %2045 = vmatprep.subr.mxu0 0.0
    %2046 = vmatpush1.msra.mxu0 0.0
    %2047 = vmatprep.subr.mxu0 0.0
    %2048 = vmatpush1.msra.mxu0 0.0
    %2049 = vmatprep.subr.mxu0 0.0
    %2050 = vmatpush1.msra.mxu0 0.0
    %2051 = vmatprep.subr.mxu0 0.0
    %2052 = vmatpush1.msra.mxu0 0.0
    %2053 = vmatprep.subr.mxu0 0.0
    %2054 = vmatpush1.msra.mxu0 0.0
    %2055 = vmatprep.subr.mxu0 0.0
    %2056 = vmatpush1.msra.mxu0 0.0
    %2057 = vmatprep.subr.mxu0 0.0
    %2058 = vmatpush1.msra.mxu0 0.0
    %2059 = vmatprep.subr.mxu0 0.0
    %2060 = vmatpush1.msra.mxu0 0.0
    %2061 = vmatprep.subr.mxu0 0.0
    %2062 = vmatpush1.msra.mxu0 0.0
    %2063 = vmatprep.subr.mxu0 0.0
    %2064 = vmatpush1.msra.mxu0 0.0
    %2065 = vmatprep.subr.mxu0 0.0
    %2066 = vmatpush1.msra.mxu0 0.0
    %2067 = vmatprep.subr.mxu0 0.0
    %2068 = vmatpush1.msra.mxu0 0.0
    %2069 = vmatprep.subr.mxu0 0.0
    %2070 = vmatpush1.msra.mxu0 0.0
    %2071 = vmatprep.subr.mxu0 0.0
    %2072 = vmatpush1.msra.mxu0 0.0
    %2073 = vmatprep.subr.mxu0 0.0
    %2074 = vmatpush1.msra.mxu0 0.0
    %2075 = vmatprep.subr.mxu0 0.0
    %2076 = vmatpush1.msra.mxu0 0.0
    %2077 = vmatprep.subr.mxu0 0.0
    %2078 = vmatpush1.msra.mxu0 0.0
    %2079 = vmatprep.subr.mxu0 0.0
    %2080 = vmatpush1.msra.mxu0 0.0
    %2081 = vmatprep.subr.mxu0 0.0
    %2082 = vmatpush1.msra.mxu0 0.0
    %2083 = vmatprep.subr.mxu0 0.0
    %2084 = vmatpush1.msra.mxu0 0.0
    %2085 = vmatprep.subr.mxu0 0.0
    %2086 = vmatpush1.msra.mxu0 0.0
    %2087 = vmatprep.subr.mxu0 0.0
    %2088 = vmatpush1.msra.mxu0 0.0
    %2089 = vmatprep.subr.mxu0 0.0
    %2090 = vmatpush1.msra.mxu0 0.0
    %2091 = vmatprep.subr.mxu0 0.0
    %2092 = vmatpush1.msra.mxu0 0.0
    %2093 = vmatprep.subr.mxu0 0.0
    %2094 = vmatpush1.msra.mxu0 0.0
    %2095 = vmatprep.subr.mxu0 0.0
    %2096 = vmatpush1.msra.mxu0 0.0
    %2097 = vmatprep.subr.mxu0 0.0
    %2098 = vmatpush1.msra.mxu0 0.0
    %2099 = vmatprep.mubr.f32.mxu0 0.0
    %2100 = vmatmul.mubr.f32.gmra.mrb[0].mxu0 %v1949
    %v2101 = vpop.f32.mrb[0].mxu0
    %v2102 = vadd.f32 %v1945, %v2101
    %v2103 = vpop.f32.mrb[0].mxu0
    %v2104 = vadd.f32 %v1945, %v2103
    %2105 = vdwg.mxu0
    %v2106 = vmax.f32 %v2031, 0.0
    %v2107 = vmax.f32 %v2033, 0.0
    %v2108 = vmax.f32 %v2102, 0.0
    %v2109 = vmax.f32 %v2104, 0.0
    %v2112 = vcombine.low %v2106, %v2107
    %v2114 = vunpack.c.l.s4 1966171168
    %v2115 = vunpack.c.0.s8 %v2114
    %v2116 = vlaneseq
    %v2117 = vshrl.u32 %v2116, 7
    %v2118 = vsub.s32 %v2115, %v2117
    %v2119 = vrot.slane %v2112, %v2118
    %v2121 = vunpack.c.l.s4 1966171168
    %v2122 = vunpack.c.0.s8 %v2121
    %v2123 = vlaneseq
    %v2124 = vshrl.u32 %v2123, 7
    %v2125 = vsub.s32 %v2122, %v2124
    %v2126 = vrot.slane %v2119, %v2125
    %vm2128 = vcmp.lt.s32.totalorder %v141, 256
    %vm2129 = vmand %vm142, %vm2128
    %2130 = vst.msk [vmem:[#allocation3] ss:$2 sm:$0x3] %vm2129, %v2126
    %v2131 = vcombine.high %v2119, %v2119
    %v2133 = vunpack.c.l.s4 1966171168
    %v2134 = vunpack.c.0.s8 %v2133
    %v2135 = vlaneseq
    %v2136 = vshrl.u32 %v2135, 7
    %v2137 = vsub.s32 %v2134, %v2136
    %v2138 = vrot.slane %v2131, %v2137
    %s2140 = scalar_lea.vmem [#allocation3], 4
    %2141 = vst.msk [vmem:[%s2140] ss:$2 sm:$0x3] %vm2129, %v2138
    %v2142 = vcombine.high %v2126, %v2126
    %s2144 = scalar_lea.vmem [#allocation3], 8
    %2145 = vst.msk [vmem:[%s2144] ss:$2 sm:$0x3] %vm2129, %v2142
    %v2146 = vcombine.high %v2138, %v2138
    %s2148 = scalar_lea.vmem [#allocation3], 12
    %2149 = vst.msk [vmem:[%s2148] ss:$2 sm:$0x3] %vm2129, %v2146
    %v2152 = vcombine.low %v2108, %v2109
    %v2154 = vunpack.c.l.s4 1966171168
    %v2155 = vunpack.c.0.s8 %v2154
    %v2156 = vlaneseq
    %v2157 = vshrl.u32 %v2156, 7
    %v2158 = vsub.s32 %v2155, %v2157
    %v2159 = vrot.slane %v2152, %v2158
    %v2161 = vunpack.c.l.s4 1966171168
    %v2162 = vunpack.c.0.s8 %v2161
    %v2163 = vlaneseq
    %v2164 = vshrl.u32 %v2163, 7
    %v2165 = vsub.s32 %v2162, %v2164
    %v2166 = vrot.slane %v2159, %v2165
    %s2168 = scalar_lea.vmem [#allocation3], 1
    %2169 = vst.msk [vmem:[%s2168] ss:$2 sm:$0x3] %vm2129, %v2166
    %v2170 = vcombine.high %v2159, %v2159
    %v2172 = vunpack.c.l.s4 1966171168
    %v2173 = vunpack.c.0.s8 %v2172
    %v2174 = vlaneseq
    %v2175 = vshrl.u32 %v2174, 7
    %v2176 = vsub.s32 %v2173, %v2175
    %v2177 = vrot.slane %v2170, %v2176
    %s2179 = scalar_lea.vmem [#allocation3], 5
    %2180 = vst.msk [vmem:[%s2179] ss:$2 sm:$0x3] %vm2129, %v2177
    %v2181 = vcombine.high %v2166, %v2166
    %s2183 = scalar_lea.vmem [#allocation3], 9
    %2184 = vst.msk [vmem:[%s2183] ss:$2 sm:$0x3] %vm2129, %v2181
    %v2185 = vcombine.high %v2177, %v2177
    %s2187 = scalar_lea.vmem [#allocation3], 13
    %2188 = vst.msk [vmem:[%s2187] ss:$2 sm:$0x3] %vm2129, %v2185
    %v2189 = vld [vmem:[#allocation3] sm:$0xff]
    %v2190 = vld [vmem:[#allocation3 + $0x8] sm:$0xff]
    %v2191 = vld [vmem:[#allocation7] sm:$0xff]
    %v2192 = vld [vmem:[#allocation7 + $0x8] sm:$0xff]
    %v2193 = vld [vmem:[#allocation7 + $0x10] sm:$0xff]
    %v2194 = vld [vmem:[#allocation7 + $0x18] sm:$0xff]
    %v2195 = vld [vmem:[#allocation7 + $0x20] sm:$0xff]
    %v2196 = vld [vmem:[#allocation7 + $0x28] sm:$0xff]
    %v2197 = vld [vmem:[#allocation7 + $0x30] sm:$0xff]
    %v2198 = vld [vmem:[#allocation7 + $0x38] sm:$0xff]
    %v2199 = vld [vmem:[%s5] sm:$0x1]
    %v2201 = vlaneseq
    %v2202 = vshrl.u32 %v2201, 7
    %v2203 = vsub.s32 0, %v2202
    %v2204 = vrot.slane %v2199, %v2203
    %v2208 = vcombine.high %v2189, %v2189
    %v2210 = vunpack.c.l.s4 1983009808
    %v2211 = vunpack.c.0.s8 %v2210
    %v2212 = vlaneseq
    %v2213 = vshrl.u32 %v2212, 7
    %v2214 = vsub.s32 %v2211, %v2213
    %v2215 = vrot.slane %v2189, %v2214
    %v2217 = vunpack.c.l.s4 1983009808
    %v2218 = vunpack.c.0.s8 %v2217
    %v2219 = vlaneseq
    %v2220 = vshrl.u32 %v2219, 7
    %v2221 = vsub.s32 %v2218, %v2220
    %v2222 = vrot.slane %v2208, %v2221
    %v2223 = vcombine.high %v2215, %v2215
    %v2224 = vcombine.high %v2222, %v2222
    %v2225 = vcombine.high %v2190, %v2190
    %v2227 = vunpack.c.l.s4 1983009808
    %v2228 = vunpack.c.0.s8 %v2227
    %v2229 = vlaneseq
    %v2230 = vshrl.u32 %v2229, 7
    %v2231 = vsub.s32 %v2228, %v2230
    %v2232 = vrot.slane %v2190, %v2231
    %v2234 = vunpack.c.l.s4 1983009808
    %v2235 = vunpack.c.0.s8 %v2234
    %v2236 = vlaneseq
    %v2237 = vshrl.u32 %v2236, 7
    %v2238 = vsub.s32 %v2235, %v2237
    %v2239 = vrot.slane %v2225, %v2238
    %v2240 = vcombine.high %v2232, %v2232
    %v2241 = vcombine.high %v2239, %v2239
    %2250 = vmatprep.subr.mxu0 %v2192
    %2251 = vmatpush1.xpose.msra.mxu0 %v2191
    %2252 = vmatprep.subr.mxu0 0.0
    %2253 = vmatpush1.xpose.msra.mxu0 0.0
    %2254 = vmatprep.subr.mxu0 0.0
    %2255 = vmatpush1.xpose.msra.mxu0 0.0
    %2256 = vmatprep.subr.mxu0 0.0
    %2257 = vmatpush1.xpose.msra.mxu0 0.0
    %2258 = vmatprep.subr.mxu0 0.0
    %2259 = vmatpush1.xpose.msra.mxu0 0.0
    %2260 = vmatprep.subr.mxu0 0.0
    %2261 = vmatpush1.xpose.msra.mxu0 0.0
    %2262 = vmatprep.subr.mxu0 0.0
    %2263 = vmatpush1.xpose.msra.mxu0 0.0
    %2264 = vmatprep.subr.mxu0 0.0
    %2265 = vmatpush1.xpose.msra.mxu0 0.0
    %2266 = vmatprep.subr.mxu0 0.0
    %2267 = vmatpush1.xpose.msra.mxu0 0.0
    %2268 = vmatprep.subr.mxu0 0.0
    %2269 = vmatpush1.xpose.msra.mxu0 0.0
    %2270 = vmatprep.subr.mxu0 0.0
    %2271 = vmatpush1.xpose.msra.mxu0 0.0
    %2272 = vmatprep.subr.mxu0 0.0
    %2273 = vmatpush1.xpose.msra.mxu0 0.0
    %2274 = vmatprep.subr.mxu0 0.0
    %2275 = vmatpush1.xpose.msra.mxu0 0.0
    %2276 = vmatprep.subr.mxu0 0.0
    %2277 = vmatpush1.xpose.msra.mxu0 0.0
    %2278 = vmatprep.subr.mxu0 0.0
    %2279 = vmatpush1.xpose.msra.mxu0 0.0
    %2280 = vmatprep.subr.mxu0 0.0
    %2281 = vmatpush1.xpose.msra.mxu0 0.0
    %2282 = vmatprep.subr.mxu0 0.0
    %2283 = vmatpush1.xpose.msra.mxu0 0.0
    %2284 = vmatprep.subr.mxu0 0.0
    %2285 = vmatpush1.xpose.msra.mxu0 0.0
    %2286 = vmatprep.subr.mxu0 0.0
    %2287 = vmatpush1.xpose.msra.mxu0 0.0
    %2288 = vmatprep.subr.mxu0 0.0
    %2289 = vmatpush1.xpose.msra.mxu0 0.0
    %2290 = vmatprep.subr.mxu0 0.0
    %2291 = vmatpush1.xpose.msra.mxu0 0.0
    %2292 = vmatprep.subr.mxu0 0.0
    %2293 = vmatpush1.xpose.msra.mxu0 0.0
    %2294 = vmatprep.subr.mxu0 0.0
    %2295 = vmatpush1.xpose.msra.mxu0 0.0
    %2296 = vmatprep.subr.mxu0 0.0
    %2297 = vmatpush1.xpose.msra.mxu0 0.0
    %2298 = vmatprep.subr.mxu0 0.0
    %2299 = vmatpush1.xpose.msra.mxu0 0.0
    %2300 = vmatprep.subr.mxu0 0.0
    %2301 = vmatpush1.xpose.msra.mxu0 0.0
    %2302 = vmatprep.subr.mxu0 0.0
    %2303 = vmatpush1.xpose.msra.mxu0 0.0
    %2304 = vmatprep.subr.mxu0 0.0
    %2305 = vmatpush1.xpose.msra.mxu0 0.0
    %2306 = vmatprep.subr.mxu0 0.0
    %2307 = vmatpush1.xpose.msra.mxu0 0.0
    %2308 = vmatprep.subr.mxu0 0.0
    %2309 = vmatpush1.xpose.msra.mxu0 0.0
    %2310 = vmatprep.subr.mxu0 0.0
    %2311 = vmatpush1.xpose.msra.mxu0 0.0
    %2312 = vmatprep.subr.mxu0 0.0
    %2313 = vmatpush1.xpose.msra.mxu0 0.0
    %2314 = vmatprep.mubr.f32.mxu0 %v2223
    %2315 = vmatmul.mubr.f32.gmra.mrb[0].mxu0 %v2215
    %v2316 = vpop.f32.mrb[0].mxu0
    %v2317 = vadd.f32 %v2204, %v2316
    %v2318 = vpop.f32.mrb[0].mxu0
    %2319 = vdwg.mxu0
    %2320 = vmatprep.subr.mxu0 %v2194
    %2321 = vmatpush1.xpose.msra.mxu0 %v2193
    %2322 = vmatprep.subr.mxu0 0.0
    %2323 = vmatpush1.xpose.msra.mxu0 0.0
    %2324 = vmatprep.subr.mxu0 0.0
    %2325 = vmatpush1.xpose.msra.mxu0 0.0
    %2326 = vmatprep.subr.mxu0 0.0
    %2327 = vmatpush1.xpose.msra.mxu0 0.0
    %2328 = vmatprep.subr.mxu0 0.0
    %2329 = vmatpush1.xpose.msra.mxu0 0.0
    %2330 = vmatprep.subr.mxu0 0.0
    %2331 = vmatpush1.xpose.msra.mxu0 0.0
    %2332 = vmatprep.subr.mxu0 0.0
    %2333 = vmatpush1.xpose.msra.mxu0 0.0
    %2334 = vmatprep.subr.mxu0 0.0
    %2335 = vmatpush1.xpose.msra.mxu0 0.0
    %2336 = vmatprep.subr.mxu0 0.0
    %2337 = vmatpush1.xpose.msra.mxu0 0.0
    %2338 = vmatprep.subr.mxu0 0.0
    %2339 = vmatpush1.xpose.msra.mxu0 0.0
    %2340 = vmatprep.subr.mxu0 0.0
    %2341 = vmatpush1.xpose.msra.mxu0 0.0
    %2342 = vmatprep.subr.mxu0 0.0
    %2343 = vmatpush1.xpose.msra.mxu0 0.0
    %2344 = vmatprep.subr.mxu0 0.0
    %2345 = vmatpush1.xpose.msra.mxu0 0.0
    %2346 = vmatprep.subr.mxu0 0.0
    %2347 = vmatpush1.xpose.msra.mxu0 0.0
    %2348 = vmatprep.subr.mxu0 0.0
    %2349 = vmatpush1.xpose.msra.mxu0 0.0
    %2350 = vmatprep.subr.mxu0 0.0
    %2351 = vmatpush1.xpose.msra.mxu0 0.0
    %2352 = vmatprep.subr.mxu0 0.0
    %2353 = vmatpush1.xpose.msra.mxu0 0.0
    %2354 = vmatprep.subr.mxu0 0.0
    %2355 = vmatpush1.xpose.msra.mxu0 0.0
    %2356 = vmatprep.subr.mxu0 0.0
    %2357 = vmatpush1.xpose.msra.mxu0 0.0
    %2358 = vmatprep.subr.mxu0 0.0
    %2359 = vmatpush1.xpose.msra.mxu0 0.0
    %2360 = vmatprep.subr.mxu0 0.0
    %2361 = vmatpush1.xpose.msra.mxu0 0.0
    %2362 = vmatprep.subr.mxu0 0.0
    %2363 = vmatpush1.xpose.msra.mxu0 0.0
    %2364 = vmatprep.subr.mxu0 0.0
    %2365 = vmatpush1.xpose.msra.mxu0 0.0
    %2366 = vmatprep.subr.mxu0 0.0
    %2367 = vmatpush1.xpose.msra.mxu0 0.0
    %2368 = vmatprep.subr.mxu0 0.0
    %2369 = vmatpush1.xpose.msra.mxu0 0.0
    %2370 = vmatprep.subr.mxu0 0.0
    %2371 = vmatpush1.xpose.msra.mxu0 0.0
    %2372 = vmatprep.subr.mxu0 0.0
    %2373 = vmatpush1.xpose.msra.mxu0 0.0
    %2374 = vmatprep.subr.mxu0 0.0
    %2375 = vmatpush1.xpose.msra.mxu0 0.0
    %2376 = vmatprep.subr.mxu0 0.0
    %2377 = vmatpush1.xpose.msra.mxu0 0.0
    %2378 = vmatprep.subr.mxu0 0.0
    %2379 = vmatpush1.xpose.msra.mxu0 0.0
    %2380 = vmatprep.subr.mxu0 0.0
    %2381 = vmatpush1.xpose.msra.mxu0 0.0
    %2382 = vmatprep.subr.mxu0 0.0
    %2383 = vmatpush1.xpose.msra.mxu0 0.0
    %2384 = vmatprep.mubr.f32.mxu0 %v2224
    %2385 = vmatmul.mubr.f32.gmra.mrb[0].mxu0 %v2222
    %v2386 = vpop.f32.mrb[0].mxu0
    %v2387 = vadd.f32 %v2317, %v2386
    %v2388 = vpop.f32.mrb[0].mxu0
    %2389 = vdwg.mxu0
    %2390 = vmatprep.subr.mxu0 %v2196
    %2391 = vmatpush1.xpose.msra.mxu0 %v2195
    %2392 = vmatprep.subr.mxu0 0.0
    %2393 = vmatpush1.xpose.msra.mxu0 0.0
    %2394 = vmatprep.subr.mxu0 0.0
    %2395 = vmatpush1.xpose.msra.mxu0 0.0
    %2396 = vmatprep.subr.mxu0 0.0
    %2397 = vmatpush1.xpose.msra.mxu0 0.0
    %2398 = vmatprep.subr.mxu0 0.0
    %2399 = vmatpush1.xpose.msra.mxu0 0.0
    %2400 = vmatprep.subr.mxu0 0.0
    %2401 = vmatpush1.xpose.msra.mxu0 0.0
    %2402 = vmatprep.subr.mxu0 0.0
    %2403 = vmatpush1.xpose.msra.mxu0 0.0
    %2404 = vmatprep.subr.mxu0 0.0
    %2405 = vmatpush1.xpose.msra.mxu0 0.0
    %2406 = vmatprep.subr.mxu0 0.0
    %2407 = vmatpush1.xpose.msra.mxu0 0.0
    %2408 = vmatprep.subr.mxu0 0.0
    %2409 = vmatpush1.xpose.msra.mxu0 0.0
    %2410 = vmatprep.subr.mxu0 0.0
    %2411 = vmatpush1.xpose.msra.mxu0 0.0
    %2412 = vmatprep.subr.mxu0 0.0
    %2413 = vmatpush1.xpose.msra.mxu0 0.0
    %2414 = vmatprep.subr.mxu0 0.0
    %2415 = vmatpush1.xpose.msra.mxu0 0.0
    %2416 = vmatprep.subr.mxu0 0.0
    %2417 = vmatpush1.xpose.msra.mxu0 0.0
    %2418 = vmatprep.subr.mxu0 0.0
    %2419 = vmatpush1.xpose.msra.mxu0 0.0
    %2420 = vmatprep.subr.mxu0 0.0
    %2421 = vmatpush1.xpose.msra.mxu0 0.0
    %2422 = vmatprep.subr.mxu0 0.0
    %2423 = vmatpush1.xpose.msra.mxu0 0.0
    %2424 = vmatprep.subr.mxu0 0.0
    %2425 = vmatpush1.xpose.msra.mxu0 0.0
    %2426 = vmatprep.subr.mxu0 0.0
    %2427 = vmatpush1.xpose.msra.mxu0 0.0
    %2428 = vmatprep.subr.mxu0 0.0
    %2429 = vmatpush1.xpose.msra.mxu0 0.0
    %2430 = vmatprep.subr.mxu0 0.0
    %2431 = vmatpush1.xpose.msra.mxu0 0.0
    %2432 = vmatprep.subr.mxu0 0.0
    %2433 = vmatpush1.xpose.msra.mxu0 0.0
    %2434 = vmatprep.subr.mxu0 0.0
    %2435 = vmatpush1.xpose.msra.mxu0 0.0
    %2436 = vmatprep.subr.mxu0 0.0
    %2437 = vmatpush1.xpose.msra.mxu0 0.0
    %2438 = vmatprep.subr.mxu0 0.0
    %2439 = vmatpush1.xpose.msra.mxu0 0.0
    %2440 = vmatprep.subr.mxu0 0.0
    %2441 = vmatpush1.xpose.msra.mxu0 0.0
    %2442 = vmatprep.subr.mxu0 0.0
    %2443 = vmatpush1.xpose.msra.mxu0 0.0
    %2444 = vmatprep.subr.mxu0 0.0
    %2445 = vmatpush1.xpose.msra.mxu0 0.0
    %2446 = vmatprep.subr.mxu0 0.0
    %2447 = vmatpush1.xpose.msra.mxu0 0.0
    %2448 = vmatprep.subr.mxu0 0.0
    %2449 = vmatpush1.xpose.msra.mxu0 0.0
    %2450 = vmatprep.subr.mxu0 0.0
    %2451 = vmatpush1.xpose.msra.mxu0 0.0
    %2452 = vmatprep.subr.mxu0 0.0
    %2453 = vmatpush1.xpose.msra.mxu0 0.0
    %2454 = vmatprep.mubr.f32.mxu0 %v2240
    %2455 = vmatmul.mubr.f32.gmra.mrb[0].mxu0 %v2232
    %v2456 = vpop.f32.mrb[0].mxu0
    %v2457 = vadd.f32 %v2387, %v2456
    %v2458 = vpop.f32.mrb[0].mxu0
    %2459 = vdwg.mxu0
    %2460 = vmatprep.subr.mxu0 %v2198
    %2461 = vmatpush1.xpose.msra.mxu0 %v2197
    %2462 = vmatprep.subr.mxu0 0.0
    %2463 = vmatpush1.xpose.msra.mxu0 0.0
    %2464 = vmatprep.subr.mxu0 0.0
    %2465 = vmatpush1.xpose.msra.mxu0 0.0
    %2466 = vmatprep.subr.mxu0 0.0
    %2467 = vmatpush1.xpose.msra.mxu0 0.0
    %2468 = vmatprep.subr.mxu0 0.0
    %2469 = vmatpush1.xpose.msra.mxu0 0.0
    %2470 = vmatprep.subr.mxu0 0.0
    %2471 = vmatpush1.xpose.msra.mxu0 0.0
    %2472 = vmatprep.subr.mxu0 0.0
    %2473 = vmatpush1.xpose.msra.mxu0 0.0
    %2474 = vmatprep.subr.mxu0 0.0
    %2475 = vmatpush1.xpose.msra.mxu0 0.0
    %2476 = vmatprep.subr.mxu0 0.0
    %2477 = vmatpush1.xpose.msra.mxu0 0.0
    %2478 = vmatprep.subr.mxu0 0.0
    %2479 = vmatpush1.xpose.msra.mxu0 0.0
    %2480 = vmatprep.subr.mxu0 0.0
    %2481 = vmatpush1.xpose.msra.mxu0 0.0
    %2482 = vmatprep.subr.mxu0 0.0
    %2483 = vmatpush1.xpose.msra.mxu0 0.0
    %2484 = vmatprep.subr.mxu0 0.0
    %2485 = vmatpush1.xpose.msra.mxu0 0.0
    %2486 = vmatprep.subr.mxu0 0.0
    %2487 = vmatpush1.xpose.msra.mxu0 0.0
    %2488 = vmatprep.subr.mxu0 0.0
    %2489 = vmatpush1.xpose.msra.mxu0 0.0
    %2490 = vmatprep.subr.mxu0 0.0
    %2491 = vmatpush1.xpose.msra.mxu0 0.0
    %2492 = vmatprep.subr.mxu0 0.0
    %2493 = vmatpush1.xpose.msra.mxu0 0.0
    %2494 = vmatprep.subr.mxu0 0.0
    %2495 = vmatpush1.xpose.msra.mxu0 0.0
    %2496 = vmatprep.subr.mxu0 0.0
    %2497 = vmatpush1.xpose.msra.mxu0 0.0
    %2498 = vmatprep.subr.mxu0 0.0
    %2499 = vmatpush1.xpose.msra.mxu0 0.0
    %2500 = vmatprep.subr.mxu0 0.0
    %2501 = vmatpush1.xpose.msra.mxu0 0.0
    %2502 = vmatprep.subr.mxu0 0.0
    %2503 = vmatpush1.xpose.msra.mxu0 0.0
    %2504 = vmatprep.subr.mxu0 0.0
    %2505 = vmatpush1.xpose.msra.mxu0 0.0
    %2506 = vmatprep.subr.mxu0 0.0
    %2507 = vmatpush1.xpose.msra.mxu0 0.0
    %2508 = vmatprep.subr.mxu0 0.0
    %2509 = vmatpush1.xpose.msra.mxu0 0.0
    %2510 = vmatprep.subr.mxu0 0.0
    %2511 = vmatpush1.xpose.msra.mxu0 0.0
    %2512 = vmatprep.subr.mxu0 0.0
    %2513 = vmatpush1.xpose.msra.mxu0 0.0
    %2514 = vmatprep.subr.mxu0 0.0
    %2515 = vmatpush1.xpose.msra.mxu0 0.0
    %2516 = vmatprep.subr.mxu0 0.0
    %2517 = vmatpush1.xpose.msra.mxu0 0.0
    %2518 = vmatprep.subr.mxu0 0.0
    %2519 = vmatpush1.xpose.msra.mxu0 0.0
    %2520 = vmatprep.subr.mxu0 0.0
    %2521 = vmatpush1.xpose.msra.mxu0 0.0
    %2522 = vmatprep.subr.mxu0 0.0
    %2523 = vmatpush1.xpose.msra.mxu0 0.0
    %2524 = vmatprep.mubr.f32.mxu0 %v2241
    %2525 = vmatmul.mubr.f32.gmra.mrb[0].mxu0 %v2239
    %v2526 = vpop.f32.mrb[0].mxu0
    %v2527 = vadd.f32 %v2457, %v2526
    %v2528 = vpop.f32.mrb[0].mxu0
    %2529 = vdwg.mxu0
    %vm2530 = vcmask 58368
    %2531 = vst.msk [vmem:[#allocation9] sm:$0x3] %vm2530, %v2527
    // Predicated region
    $region34: #{tpu_custom_call.1} parent=1 // pred_check
      _
    $region35: #{tpu_custom_call.1} parent=1 // pred_check_branch
      %2533 = sbr.rel (0) target = $region37
    $region36: #{tpu_custom_call.1} parent=1 // pred_region
      %s2535 = ssub.s32 32, 32
      %2536 = vsyncadd [#allocation6], %s2535
      %s2538 = sshll.u32 [#allocation9], 4
      %s2539 = int_to_ptr.vmem [resolvable:$true] %s2538
      %2541 = dma.vmem_to_hbm [thread:$0]  %s2539, 32, %s6, [#allocation6]
    $region37: #{tpu_custom_call.1} parent=1 // pred_fallthru
      _
    // Predicated region
    $region38: #{tpu_custom_call.1} parent=1 // pred_check
      _
    $region39: #{tpu_custom_call.1} parent=1 // pred_check_branch
      %2543 = sbr.rel (0) target = $region41
    $region40: #{tpu_custom_call.1} parent=1 // pred_region
      %2544 = dma.done [#allocation6], 32
    $region41: #{tpu_custom_call.1} parent=1 // pred_fallthru
      _
    %2545 = vsyncpa [#allocation5], 1
    %2546 = vsyncpa [#allocation8], 1
    %2547 = vsyncpa [#allocation6], 1

</llo_original>
